<compile_context>
chip_gen: v7x
topology: tpu7x:2x2x1
jax: 0.10.0
libtpu: 0.0.40
codegen_flags: <defaults>
</compile_context>

<pallas_src>
import functools
import math

import numpy as np
import jax
import jax.numpy as jnp
from jax.experimental import pallas as pl
from jax.experimental.pallas import tpu as pltpu

# Feature table sizes in fused-table order: minute, hour, weekday, day, month (sum = 80).
_FEATURE_SIZES = (4, 24, 7, 32, 13)
_FUSED_ROWS = 128  # pad to a full 128-wide MXU contraction


def _round_up(x, m):
    return (x + m - 1) // m * m


def _cdiv(a, b):
    return -(-a // b)


def _fixed_embedding_table(c_in: int, d_model: int) -> np.ndarray:
    """Reproduce FixedEmbedding.__init__ weight construction (deterministic, frozen)."""
    w = np.zeros((c_in, d_model), dtype=np.float32)
    position = np.arange(0, c_in, dtype=np.float32)[:, None]
    div_term = np.exp(
        np.arange(0, d_model, 2, dtype=np.float32) * -(math.log(10000.0) / d_model)
    )
    w[:, 0::2] = np.sin(position * div_term)
    w[:, 1::2] = np.cos(position * div_term)
    return w


@functools.lru_cache(maxsize=None)
def _fused_table_and_offsets(d_model: int):
    """Fused (128, round_up(D,128)) table.

    Rows [0:4)=minute, [4:28)=hour, [28:35)=weekday, [35:67)=day, [67:80)=month,
    [80:128)=zeros.
    """
    d_pad = _round_up(d_model, 128)
    fused = np.zeros((_FUSED_ROWS, d_pad), dtype=np.float32)
    offsets = []
    off = 0
    for c in _FEATURE_SIZES:
        offsets.append(off)
        fused[off:off + c, :d_model] = _fixed_embedding_table(c, d_model)
        off += c
    return fused, tuple(offsets)


def _vmem_budget_bytes() -> int:
    """Per-generation VMEM budget: 3/4 of physical, capped at 96 MiB, 48 MiB fallback."""
    try:
        phys = int(pltpu.get_tpu_info().vmem_capacity_bytes)
    except Exception:
        phys = 64 * 1024 * 1024  # v7x per-TC physical: the safest floor
    return min(phys * 3 // 4, 96 * 1024 * 1024)


def _temporal_embedding_kernel(x_ref, tbl_ref, o_ref, *, col_offsets):
    # x_ref  : (TILE_N, n_feat) int32 raw time features (PyTorch column order)
    # tbl_ref: (128, D_pad) f32 fused fixed sinusoidal tables (zero padded)
    # o_ref  : (TILE_N, D_pad) out_dtype
    n = o_ref.shape[0]
    xs = x_ref[...]
    iota = jax.lax.broadcasted_iota(jnp.int32, (n, _FUSED_ROWS), 1)  # (n, 128)
    # Disjoint fused row ranges -> boolean OR == sum; single cast at the end.
    hot = (xs[:, 0:1] + col_offsets[0]) == iota
    for f in range(1, len(col_offsets)):
        hot = hot | ((xs[:, f:f + 1] + col_offsets[f]) == iota)
    hot = hot.astype(jnp.float32)
    # One 128-wide-contraction MXU matmul = sum of the (up to) five embedding lookups.
    acc = jnp.dot(hot, tbl_ref[...],
                  preferred_element_type=jnp.float32,
                  precision=jax.lax.Precision.HIGHEST)
    o_ref[...] = acc.astype(o_ref.dtype)


def temporal_embedding(x, d_model, freq='t', out_dtype=jnp.float32, max_tile_rows=4096):
    """x: (B, L, F) integer time features, PyTorch column order [month, day, weekday, hour,
    minute].  Returns (B, L, d_model) matching TemporalEmbedding(embed_type='fixed').forward.
    Note: out-of-range feature indices silently contribute 0 (nn.Embedding would error).
    """
    if d_model % 2 != 0:
        raise ValueError("d_model must be even (same constraint as PyTorch FixedEmbedding).")
    B, L, F = x.shape
    if F < 4:
        raise ValueError("x must carry at least [month, day, weekday, hour] features.")
    use_minute = (freq == 't')
    if use_minute and F < 5:
        raise ValueError("freq='t' requires >= 5 time features (PyTorch would index x[...,4]).")
    n_feat = 5 if use_minute else 4
    N = B * L

    fused_np, offs = _fused_table_and_offsets(d_model)
    d_pad = fused_np.shape[1]
    table = jnp.asarray(fused_np)

    # Fused-row offsets in PyTorch column order [month, day, weekday, hour, (minute)].
    col_offsets = (offs[4], offs[3], offs[2], offs[1], offs[0])[:n_feat]

    x_in = x.reshape(N, F).astype(jnp.int32)[:, :n_feat]

    # --- VMEM-budget-aware, balanced tiling over N ---
    budget = _vmem_budget_bytes()
    table_bytes = 2 * _FUSED_ROWS * d_pad * 4          # conservative: assume 2 table buffers
    per_row = d_pad * 8 + 2048                         # out dbl-buf + idx tile + hot scratch
    slack = 2 * 1024 * 1024
    tile_max = (budget - table_bytes - slack) // per_row
    tile_max = max(8, min(int(max_tile_rows), (tile_max // 8) * 8))

    num_tiles = _cdiv(N, tile_max)
    if num_tiles == 1 and N >= 2048:
        num_tiles = 2                                  # give both v7x TensorCores work
    if num_tiles > 1 and num_tiles % 2 == 1:
        num_tiles += 1                                 # even step count for megacore balance
    tile = _round_up(_cdiv(N, num_tiles), 8)           # balanced tiles -> minimal padding
    n_pad = tile * num_tiles
    if n_pad != N:
        x_in = jnp.pad(x_in, ((0, n_pad - N), (0, 0)))  # padded rows are sliced off below

    kernel = functools.partial(_temporal_embedding_kernel, col_offsets=col_offsets)

    def _call(table_spec):
        return pl.pallas_call(
            kernel,
            out_shape=jax.ShapeDtypeStruct((n_pad, d_pad), out_dtype),
            grid=(num_tiles,),
            in_specs=[
                pl.BlockSpec((tile, n_feat), lambda i: (i, 0)),   # index tile
                table_spec,                                        # fused table (resident)
            ],
            out_specs=pl.BlockSpec((tile, d_pad), lambda i: (i, 0)),
            compiler_params=pltpu.CompilerParams(
                dimension_semantics=("parallel",),
                vmem_limit_bytes=int(budget),
            ),
        )(x_in, table)

    try:
        # Constant block index across the grid -> single-buffer the table.
        out = _call(pl.BlockSpec((_FUSED_ROWS, d_pad), lambda i: (0, 0),
                                 pipeline_mode=pl.Buffered(1)))
    except Exception:
        # Fallback: default (double-buffered) resident table; slightly more VMEM only.
        out = _call(pl.BlockSpec((_FUSED_ROWS, d_pad), lambda i: (0, 0)))

    return out[:N, :d_model].reshape(B, L, d_model)


def _reference(x, d_model, freq='t'):
    """Pure-JAX reference mirroring the PyTorch forward."""
    minute_tbl = jnp.asarray(_fixed_embedding_table(4, d_model))
    hour_tbl = jnp.asarray(_fixed_embedding_table(24, d_model))
    weekday_tbl = jnp.asarray(_fixed_embedding_table(7, d_model))
    day_tbl = jnp.asarray(_fixed_embedding_table(32, d_model))
    month_tbl = jnp.asarray(_fixed_embedding_table(13, d_model))
    x = x.astype(jnp.int32)
    minute_x = minute_tbl[x[:, :, 4]] if freq == 't' else 0.0
    hour_x = hour_tbl[x[:, :, 3]]
    weekday_x = weekday_tbl[x[:, :, 2]]
    day_x = day_tbl[x[:, :, 1]]
    month_x = month_tbl[x[:, :, 0]]
    return hour_x + weekday_x + day_x + month_x + minute_x


if __name__ == "__main__":
    B, L, d_model = 2, 8, 32

    key = jax.random.PRNGKey(0)
    k_mon, k_day, k_wd, k_hr, k_min = jax.random.split(key, 5)
    month = jax.random.randint(k_mon, (B, L), 0, 13, dtype=jnp.int32)
    day = jax.random.randint(k_day, (B, L), 0, 32, dtype=jnp.int32)
    weekday = jax.random.randint(k_wd, (B, L), 0, 7, dtype=jnp.int32)
    hour = jax.random.randint(k_hr, (B, L), 0, 24, dtype=jnp.int32)
    minute = jax.random.randint(k_min, (B, L), 0, 4, dtype=jnp.int32)
    x = jnp.stack([month, day, weekday, hour, minute], axis=-1)  # (B, L, 5)

    # freq='t': all five tables.
    out = jax.block_until_ready(temporal_embedding(x, d_model, freq='t'))
    ref = _reference(x, d_model, freq='t')
    assert out.shape == (B, L, d_model)
    np.testing.assert_allclose(np.asarray(out), np.asarray(ref), atol=1e-5, rtol=1e-5)

    # freq != 't': minute embedding contributes exactly zero (only 4 feature columns used).
    out_h = jax.block_until_ready(temporal_embedding(x, d_model, freq='h'))
    ref_h = _reference(x, d_model, freq='h')
    np.testing.assert_allclose(np.asarray(out_h), np.asarray(ref_h), atol=1e-5, rtol=1e-5)

    # Multi-tile + ragged-N path: forces 2 grid steps and row padding (N=14, tile=8).
    x2 = x[:, :7, :]
    out_m = jax.block_until_ready(
        temporal_embedding(x2, d_model, freq='t', max_tile_rows=8))
    ref_m = _reference(x2, d_model, freq='t')
    np.testing.assert_allclose(np.asarray(out_m), np.asarray(ref_m), atol=1e-5, rtol=1e-5)

    print("KERNEL_OK")
</pallas_src>

<mosaic_0001>
module attributes {stable_mosaic.version = 11 : i64} {
  func.func @_temporal_embedding_kernel(%arg0: i32, %arg1: memref<16x5xi32, #tpu.memory_space<vmem>>, %arg2: memref<128x128xf32, #tpu.memory_space<vmem>>, %arg3: memref<16x128xf32, #tpu.memory_space<vmem>>) attributes {dimension_semantics = [#tpu.dimension_semantics<parallel>], iteration_bounds = array<i64: 1>, scalar_prefetch = 0 : i64, scratch_operands = 0 : i64, tpu.core_type = #tpu.core_type<tc>, window_params = [{transform_indices = @transform_0, window_bounds = array<i64: 16, 5>}, {pipeline_mode = #tpu.pipeline_mode<synchronous>, transform_indices = @transform_1, window_bounds = array<i64: 128, 128>}, {transform_indices = @transform_2, window_bounds = array<i64: 16, 128>}]} {
    %c0 = arith.constant 0 : index
    %c0_0 = arith.constant 0 : index
    %0 = vector.load %arg1[%c0, %c0_0] : memref<16x5xi32, #tpu.memory_space<vmem>>, vector<16x5xi32>
    %1 = tpu.iota {dimensions = array<i32: 1>} : vector<16x128xi32>
    %2 = vector.extract_strided_slice %0 {offsets = [0, 0], sizes = [16, 1], strides = [1, 1]} : vector<16x5xi32> to vector<16x1xi32>
    %c67_i32 = arith.constant 67 : i32
    %3 = vector.broadcast %c67_i32 : i32 to vector<16x1xi32>
    %4 = arith.addi %2, %3 : vector<16x1xi32>
    %5 = vector.broadcast %4 : vector<16x1xi32> to vector<16x128xi32>
    %6 = arith.cmpi eq, %5, %1 : vector<16x128xi32>
    %7 = vector.extract_strided_slice %0 {offsets = [0, 1], sizes = [16, 1], strides = [1, 1]} : vector<16x5xi32> to vector<16x1xi32>
    %c35_i32 = arith.constant 35 : i32
    %8 = vector.broadcast %c35_i32 : i32 to vector<16x1xi32>
    %9 = arith.addi %7, %8 : vector<16x1xi32>
    %10 = vector.broadcast %9 : vector<16x1xi32> to vector<16x128xi32>
    %11 = arith.cmpi eq, %10, %1 : vector<16x128xi32>
    %12 = arith.ori %6, %11 : vector<16x128xi1>
    %13 = vector.extract_strided_slice %0 {offsets = [0, 2], sizes = [16, 1], strides = [1, 1]} : vector<16x5xi32> to vector<16x1xi32>
    %c28_i32 = arith.constant 28 : i32
    %14 = vector.broadcast %c28_i32 : i32 to vector<16x1xi32>
    %15 = arith.addi %13, %14 : vector<16x1xi32>
    %16 = vector.broadcast %15 : vector<16x1xi32> to vector<16x128xi32>
    %17 = arith.cmpi eq, %16, %1 : vector<16x128xi32>
    %18 = arith.ori %12, %17 : vector<16x128xi1>
    %19 = vector.extract_strided_slice %0 {offsets = [0, 3], sizes = [16, 1], strides = [1, 1]} : vector<16x5xi32> to vector<16x1xi32>
    %c4_i32 = arith.constant 4 : i32
    %20 = vector.broadcast %c4_i32 : i32 to vector<16x1xi32>
    %21 = arith.addi %19, %20 : vector<16x1xi32>
    %22 = vector.broadcast %21 : vector<16x1xi32> to vector<16x128xi32>
    %23 = arith.cmpi eq, %22, %1 : vector<16x128xi32>
    %24 = arith.ori %18, %23 : vector<16x128xi1>
    %25 = vector.extract_strided_slice %0 {offsets = [0, 4], sizes = [16, 1], strides = [1, 1]} : vector<16x5xi32> to vector<16x1xi32>
    %c0_i32 = arith.constant 0 : i32
    %26 = vector.broadcast %c0_i32 : i32 to vector<16x1xi32>
    %27 = arith.addi %25, %26 : vector<16x1xi32>
    %28 = vector.broadcast %27 : vector<16x1xi32> to vector<16x128xi32>
    %29 = arith.cmpi eq, %28, %1 : vector<16x128xi32>
    %30 = arith.ori %24, %29 : vector<16x128xi1>
    %31 = arith.extui %30 : vector<16x128xi1> to vector<16x128xi32>
    %32 = arith.sitofp %31 : vector<16x128xi32> to vector<16x128xf32>
    %c0_1 = arith.constant 0 : index
    %c0_2 = arith.constant 0 : index
    %33 = vector.load %arg2[%c0_1, %c0_2] : memref<128x128xf32, #tpu.memory_space<vmem>>, vector<128x128xf32>
    %cst = arith.constant dense<0.000000e+00> : vector<16x128xf32>
    %34 = tpu.matmul %32, %33, %cst {dimension_numbers = #tpu.dot_dimension_numbers<[1], [0], [0], [1], [0, 0, 1, 1], [], []>, precision = #tpu.contract_precision<fp32>} : vector<16x128xf32>, vector<128x128xf32>, vector<16x128xf32> -> vector<16x128xf32>
    %c0_3 = arith.constant 0 : index
    %c0_4 = arith.constant 0 : index
    %35 = vector.load %arg3[%c0_3, %c0_4] : memref<16x128xf32, #tpu.memory_space<vmem>>, vector<16x128xf32>
    tpu.vector_store %arg3[%c0_3, %c0_4], %34 {strides = array<i32>} : memref<16x128xf32, #tpu.memory_space<vmem>>, vector<16x128xf32>,
    return
  }
  func.func @transform_0(%arg0: i32) -> (i32, i32) {
    %c0_i32 = arith.constant 0 : i32
    %c0_i32_0 = arith.constant 0 : i32
    return %arg0, %c0_i32 : i32, i32
  }
  func.func @transform_1(%arg0: i32) -> (i32, i32) {
    %c0_i32 = arith.constant 0 : i32
    %c0_i32_0 = arith.constant 0 : i32
    %c0_i32_1 = arith.constant 0 : i32
    return %c0_i32, %c0_i32_0 : i32, i32
  }
  func.func @transform_2(%arg0: i32) -> (i32, i32) {
    %c0_i32 = arith.constant 0 : i32
    %c0_i32_0 = arith.constant 0 : i32
    return %arg0, %c0_i32 : i32, i32
  }
}

module attributes {stable_mosaic.version = 11 : i64} {
  func.func @_temporal_embedding_kernel(%arg0: i32, %arg1: memref<16x5xi32, #tpu.memory_space<vmem>>, %arg2: memref<128x128xf32, #tpu.memory_space<vmem>>, %arg3: memref<16x128xf32, #tpu.memory_space<vmem>>) attributes {dimension_semantics = [#tpu.dimension_semantics<parallel>], iteration_bounds = array<i64: 1>, scalar_prefetch = 0 : i64, scratch_operands = 0 : i64, tpu.core_type = #tpu.core_type<tc>, window_params = [{transform_indices = @transform_0, window_bounds = array<i64: 16, 5>}, {pipeline_mode = #tpu.pipeline_mode<synchronous>, transform_indices = @transform_1, window_bounds = array<i64: 128, 128>}, {transform_indices = @transform_2, window_bounds = array<i64: 16, 128>}]} {
    %c0 = arith.constant 0 : index
    %c0_0 = arith.constant 0 : index
    %0 = vector.load %arg1[%c0, %c0_0] : memref<16x5xi32, #tpu.memory_space<vmem>>, vector<16x5xi32>
    %1 = tpu.iota {dimensions = array<i32: 1>} : vector<16x128xi32>
    %2 = vector.extract_strided_slice %0 {offsets = [0, 0], sizes = [16, 1], strides = [1, 1]} : vector<16x5xi32> to vector<16x1xi32>
    %c67_i32 = arith.constant 67 : i32
    %3 = vector.broadcast %c67_i32 : i32 to vector<16x1xi32>
    %4 = arith.addi %2, %3 : vector<16x1xi32>
    %5 = vector.broadcast %4 : vector<16x1xi32> to vector<16x128xi32>
    %6 = arith.cmpi eq, %5, %1 : vector<16x128xi32>
    %7 = vector.extract_strided_slice %0 {offsets = [0, 1], sizes = [16, 1], strides = [1, 1]} : vector<16x5xi32> to vector<16x1xi32>
    %c35_i32 = arith.constant 35 : i32
    %8 = vector.broadcast %c35_i32 : i32 to vector<16x1xi32>
    %9 = arith.addi %7, %8 : vector<16x1xi32>
    %10 = vector.broadcast %9 : vector<16x1xi32> to vector<16x128xi32>
    %11 = arith.cmpi eq, %10, %1 : vector<16x128xi32>
    %12 = arith.ori %6, %11 : vector<16x128xi1>
    %13 = vector.extract_strided_slice %0 {offsets = [0, 2], sizes = [16, 1], strides = [1, 1]} : vector<16x5xi32> to vector<16x1xi32>
    %c28_i32 = arith.constant 28 : i32
    %14 = vector.broadcast %c28_i32 : i32 to vector<16x1xi32>
    %15 = arith.addi %13, %14 : vector<16x1xi32>
    %16 = vector.broadcast %15 : vector<16x1xi32> to vector<16x128xi32>
    %17 = arith.cmpi eq, %16, %1 : vector<16x128xi32>
    %18 = arith.ori %12, %17 : vector<16x128xi1>
    %19 = vector.extract_strided_slice %0 {offsets = [0, 3], sizes = [16, 1], strides = [1, 1]} : vector<16x5xi32> to vector<16x1xi32>
    %c4_i32 = arith.constant 4 : i32
    %20 = vector.broadcast %c4_i32 : i32 to vector<16x1xi32>
    %21 = arith.addi %19, %20 : vector<16x1xi32>
    %22 = vector.broadcast %21 : vector<16x1xi32> to vector<16x128xi32>
    %23 = arith.cmpi eq, %22, %1 : vector<16x128xi32>
    %24 = arith.ori %18, %23 : vector<16x128xi1>
    %25 = vector.extract_strided_slice %0 {offsets = [0, 4], sizes = [16, 1], strides = [1, 1]} : vector<16x5xi32> to vector<16x1xi32>
    %c0_i32 = arith.constant 0 : i32
    %26 = vector.broadcast %c0_i32 : i32 to vector<16x1xi32>
    %27 = arith.addi %25, %26 : vector<16x1xi32>
    %28 = vector.broadcast %27 : vector<16x1xi32> to vector<16x128xi32>
    %29 = arith.cmpi eq, %28, %1 : vector<16x128xi32>
    %30 = arith.ori %24, %29 : vector<16x128xi1>
    %31 = arith.extui %30 : vector<16x128xi1> to vector<16x128xi32>
    %32 = arith.sitofp %31 : vector<16x128xi32> to vector<16x128xf32>
    %c0_1 = arith.constant 0 : index
    %c0_2 = arith.constant 0 : index
    %33 = vector.load %arg2[%c0_1, %c0_2] : memref<128x128xf32, #tpu.memory_space<vmem>>, vector<128x128xf32>
    %cst = arith.constant dense<0.000000e+00> : vector<16x128xf32>
    %34 = tpu.matmul %32, %33, %cst {dimension_numbers = #tpu.dot_dimension_numbers<[1], [0], [0], [1], [0, 0, 1, 1], [], []>, precision = #tpu.contract_precision<fp32>} : vector<16x128xf32>, vector<128x128xf32>, vector<16x128xf32> -> vector<16x128xf32>
    %c0_3 = arith.constant 0 : index
    %c0_4 = arith.constant 0 : index
    %35 = vector.load %arg3[%c0_3, %c0_4] : memref<16x128xf32, #tpu.memory_space<vmem>>, vector<16x128xf32>
    tpu.vector_store %arg3[%c0_3, %c0_4], %34 {strides = array<i32>} : memref<16x128xf32, #tpu.memory_space<vmem>>, vector<16x128xf32>,
    return
  }
  func.func @transform_0(%arg0: i32) -> (i32, i32) {
    %c0_i32 = arith.constant 0 : i32
    %c0_i32_0 = arith.constant 0 : i32
    return %arg0, %c0_i32 : i32, i32
  }
  func.func @transform_1(%arg0: i32) -> (i32, i32) {
    %c0_i32 = arith.constant 0 : i32
    %c0_i32_0 = arith.constant 0 : i32
    %c0_i32_1 = arith.constant 0 : i32
    return %c0_i32, %c0_i32_0 : i32, i32
  }
  func.func @transform_2(%arg0: i32) -> (i32, i32) {
    %c0_i32 = arith.constant 0 : i32
    %c0_i32_0 = arith.constant 0 : i32
    return %arg0, %c0_i32 : i32, i32
  }
}

</mosaic_0001>

<llo_original>
// kernel: tpu_custom_call.1
$region0: #{tpu_custom_call.1}
  #allocation0 [shape = 'u32[]', space=smem, size = 0x4, offset = 0x4, fixed_abs, tag = 'smem constant byte address 0x4 - core index']
  #allocation1 [shape = 'u32[144,128]{1,0:T(1,128)}', space=vmem, size = 0x12000, scoped, tag = 'internal scratch']
  %s0 = inlined_call_operand.vmem [shape: s32[16,5], index: 0, kind: input, shape index: {}]
  %s1 = inlined_call_operand.hbm [shape: f32[128,128], index: 1, kind: input, shape index: {}]
  %s2 = inlined_call_operand.hbm [shape: f32[16,128], index: 2, kind: output, shape index: {}]
  %s3 = sld [smem:[#allocation0]]
  $region22: #{tpu_custom_call.1} parent=0
    _
  %s5 = ssub.s32 1, %s3
  %s6 = scalar_select 0, %s5, %s3
  $region1: #{tpu_custom_call.1} parent=0
    #allocation2 [shape = 'u8[65536]{0}', space=vmem, size = 0x10000, scoped, tag = 'input window, operand 1, single buffered']
    #allocation3 [shape = 's32[1]{0}', space=sflag, size = 0x4, scoped, tag = 'scoped memory for tpu_custom_call.1']
    #allocation4 [shape = 's32[1]{0}', space=sflag, size = 0x4, scoped, tag = 'scoped memory for tpu_custom_call.1']
    #allocation5 [shape = 'u8[8192]{0}', space=vmem, size = 0x2000, scoped, tag = 'output window, operand 0, single buffered']
    %7 = vsyncpa [#allocation3], 0
    %8 = vsyncpa [#allocation4], 0
    // Predicated region
    $region2: #{tpu_custom_call.1} parent=1 // pred_check
      _
    $region3: #{tpu_custom_call.1} parent=1 // pred_check_branch
      %10 = sbr.rel (0) target = $region5
    $region4: #{tpu_custom_call.1} parent=1 // pred_region
      _
    $region5: #{tpu_custom_call.1} parent=1 // pred_fallthru
      _
    // Predicated region
    $region6: #{tpu_custom_call.1} parent=1 // pred_check
      _
    $region7: #{tpu_custom_call.1} parent=1 // pred_check_branch
      %12 = sbr.rel (0) target = $region9
    $region8: #{tpu_custom_call.1} parent=1 // pred_region
      %s14 = ssub.s32 2048, 2048
      %15 = vsyncadd [#allocation3], %s14
      %s16 = sshll.u32 [#allocation2], 4
      %s17 = int_to_ptr.vmem [resolvable:$true] %s16
      %22 = dma.hbm_to_vmem [thread:$0]  %s1, 2048, %s17, [#allocation3], 128, 128, 8
    $region9: #{tpu_custom_call.1} parent=1 // pred_fallthru
      _
    // Predicated region
    $region10: #{tpu_custom_call.1} parent=1 // pred_check
      _
    $region11: #{tpu_custom_call.1} parent=1 // pred_check_branch
      %24 = sbr.rel (0) target = $region13
    $region12: #{tpu_custom_call.1} parent=1 // pred_region
      %25 = dma.done [#allocation3], 2048
    $region13: #{tpu_custom_call.1} parent=1 // pred_fallthru
      _
    %v26 = vld [vmem:[%s0] sm:$0xff]
    %v27 = vld [vmem:[%s0 + $0x8] sm:$0xff]
    %v28 = vlaneseq
    %v29 = vand.u32 %v28, 127
    %v30 = vadd.s32 %v26, 67
    %v31 = vadd.s32 %v27, 67
    %32 = vset.pattern.permute.xlu0 0
    %33 = vperm.xlu0 %32, %v30
    %v34 = vpop.permute.xlu0 %33
    %35 = vset.pattern.permute.xlu0 0
    %36 = vperm.xlu0 %35, %v31
    %v37 = vpop.permute.xlu0 %36
    %vm38 = vcmp.eq.s32.totalorder %v34, %v29
    %vm39 = vcmp.eq.s32.totalorder %v37, %v29
    %v40 = vadd.s32 %v26, 35
    %v41 = vadd.s32 %v27, 35
    %42 = vset.pattern.permute.xlu0 1
    %43 = vperm.xlu0 %42, %v40
    %v44 = vpop.permute.xlu0 %43
    %45 = vset.pattern.permute.xlu0 1
    %46 = vperm.xlu0 %45, %v41
    %v47 = vpop.permute.xlu0 %46
    %vm48 = vcmp.eq.s32.totalorder %v44, %v29
    %vm49 = vcmp.eq.s32.totalorder %v47, %v29
    %vm50 = vmor %vm38, %vm48
    %vm51 = vmor %vm39, %vm49
    %v52 = vadd.s32 %v26, 28
    %v53 = vadd.s32 %v27, 28
    %54 = vset.pattern.permute.xlu0 2
    %55 = vperm.xlu0 %54, %v52
    %v56 = vpop.permute.xlu0 %55
    %57 = vset.pattern.permute.xlu0 2
    %58 = vperm.xlu0 %57, %v53
    %v59 = vpop.permute.xlu0 %58
    %vm60 = vcmp.eq.s32.totalorder %v56, %v29
    %vm61 = vcmp.eq.s32.totalorder %v59, %v29
    %vm62 = vmor %vm50, %vm60
    %vm63 = vmor %vm51, %vm61
    %v64 = vadd.s32 %v26, 4
    %v65 = vadd.s32 %v27, 4
    %66 = vset.pattern.permute.xlu0 3
    %67 = vperm.xlu0 %66, %v64
    %v68 = vpop.permute.xlu0 %67
    %69 = vset.pattern.permute.xlu0 3
    %70 = vperm.xlu0 %69, %v65
    %v71 = vpop.permute.xlu0 %70
    %vm72 = vcmp.eq.s32.totalorder %v68, %v29
    %vm73 = vcmp.eq.s32.totalorder %v71, %v29
    %vm74 = vmor %vm62, %vm72
    %vm75 = vmor %vm63, %vm73
    %76 = vset.pattern.permute.xlu0 4
    %77 = vperm.xlu0 %76, %v26
    %v78 = vpop.permute.xlu0 %77
    %79 = vset.pattern.permute.xlu0 4
    %80 = vperm.xlu0 %79, %v27
    %v81 = vpop.permute.xlu0 %80
    %vm82 = vcmp.eq.s32.totalorder %v78, %v29
    %vm83 = vcmp.eq.s32.totalorder %v81, %v29
    %vm84 = vmor %vm74, %vm82
    %vm85 = vmor %vm75, %vm83
    %v86 = vsel %vm84, 1, 0
    %v87 = vsel %vm85, 1, 0
    %v88 = vcvt.s32.f32 %v86
    %v89 = vcvt.s32.f32 %v87
    %v90 = vld [vmem:[#allocation2] sm:$0xff]
    %v91 = vld [vmem:[#allocation2 + $0x8] sm:$0xff]
    %v92 = vld [vmem:[#allocation2 + $0x10] sm:$0xff]
    %v93 = vld [vmem:[#allocation2 + $0x18] sm:$0xff]
    %v94 = vld [vmem:[#allocation2 + $0x20] sm:$0xff]
    %v95 = vld [vmem:[#allocation2 + $0x28] sm:$0xff]
    %v96 = vld [vmem:[#allocation2 + $0x30] sm:$0xff]
    %v97 = vld [vmem:[#allocation2 + $0x38] sm:$0xff]
    %v98 = vld [vmem:[#allocation2 + $0x40] sm:$0xff]
    %v99 = vld [vmem:[#allocation2 + $0x48] sm:$0xff]
    %v100 = vld [vmem:[#allocation2 + $0x50] sm:$0xff]
    %v101 = vld [vmem:[#allocation2 + $0x58] sm:$0xff]
    %v102 = vld [vmem:[#allocation2 + $0x60] sm:$0xff]
    %v103 = vld [vmem:[#allocation2 + $0x68] sm:$0xff]
    %v104 = vld [vmem:[#allocation2 + $0x70] sm:$0xff]
    %v105 = vld [vmem:[#allocation2 + $0x78] sm:$0xff]
    %106 = vmatprep.subr.mxu0 0.0
    %v107 = vand.u32 %v90, 4294901760
    %108 = vmatpush1.msra.mxu0 %v107
    %109 = vmatprep.subr.mxu0 0.0
    %v110 = vand.u32 %v91, 4294901760
    %111 = vmatpush1.msra.mxu0 %v110
    %112 = vmatprep.subr.mxu0 0.0
    %v113 = vand.u32 %v92, 4294901760
    %114 = vmatpush1.msra.mxu0 %v113
    %115 = vmatprep.subr.mxu0 0.0
    %v116 = vand.u32 %v93, 4294901760
    %117 = vmatpush1.msra.mxu0 %v116
    %118 = vmatprep.subr.mxu0 0.0
    %v119 = vand.u32 %v94, 4294901760
    %120 = vmatpush1.msra.mxu0 %v119
    %121 = vmatprep.subr.mxu0 0.0
    %v122 = vand.u32 %v95, 4294901760
    %123 = vmatpush1.msra.mxu0 %v122
    %124 = vmatprep.subr.mxu0 0.0
    %v125 = vand.u32 %v96, 4294901760
    %126 = vmatpush1.msra.mxu0 %v125
    %127 = vmatprep.subr.mxu0 0.0
    %v128 = vand.u32 %v97, 4294901760
    %129 = vmatpush1.msra.mxu0 %v128
    %130 = vmatprep.subr.mxu0 0.0
    %v131 = vand.u32 %v98, 4294901760
    %132 = vmatpush1.msra.mxu0 %v131
    %133 = vmatprep.subr.mxu0 0.0
    %v134 = vand.u32 %v99, 4294901760
    %135 = vmatpush1.msra.mxu0 %v134
    %136 = vmatprep.subr.mxu0 0.0
    %v137 = vand.u32 %v100, 4294901760
    %138 = vmatpush1.msra.mxu0 %v137
    %139 = vmatprep.subr.mxu0 0.0
    %v140 = vand.u32 %v101, 4294901760
    %141 = vmatpush1.msra.mxu0 %v140
    %142 = vmatprep.subr.mxu0 0.0
    %v143 = vand.u32 %v102, 4294901760
    %144 = vmatpush1.msra.mxu0 %v143
    %145 = vmatprep.subr.mxu0 0.0
    %v146 = vand.u32 %v103, 4294901760
    %147 = vmatpush1.msra.mxu0 %v146
    %148 = vmatprep.subr.mxu0 0.0
    %v149 = vand.u32 %v104, 4294901760
    %150 = vmatpush1.msra.mxu0 %v149
    %151 = vmatprep.subr.mxu0 0.0
    %v152 = vand.u32 %v105, 4294901760
    %153 = vmatpush1.msra.mxu0 %v152
    %154 = vmatprep.subr.mxu0 0.0
    %155 = vmatpush1.msra.mxu0 0.0
    %156 = vmatprep.subr.mxu0 0.0
    %157 = vmatpush1.msra.mxu0 0.0
    %158 = vmatprep.subr.mxu0 0.0
    %159 = vmatpush1.msra.mxu0 0.0
    %160 = vmatprep.subr.mxu0 0.0
    %161 = vmatpush1.msra.mxu0 0.0
    %162 = vmatprep.subr.mxu0 0.0
    %163 = vmatpush1.msra.mxu0 0.0
    %164 = vmatprep.subr.mxu0 0.0
    %165 = vmatpush1.msra.mxu0 0.0
    %166 = vmatprep.subr.mxu0 0.0
    %167 = vmatpush1.msra.mxu0 0.0
    %168 = vmatprep.subr.mxu0 0.0
    %169 = vmatpush1.msra.mxu0 0.0
    %170 = vmatprep.subr.mxu0 0.0
    %171 = vmatpush1.msra.mxu0 0.0
    %172 = vmatprep.subr.mxu0 0.0
    %173 = vmatpush1.msra.mxu0 0.0
    %174 = vmatprep.subr.mxu0 0.0
    %175 = vmatpush1.msra.mxu0 0.0
    %176 = vmatprep.subr.mxu0 0.0
    %177 = vmatpush1.msra.mxu0 0.0
    %178 = vmatprep.subr.mxu0 0.0
    %179 = vmatpush1.msra.mxu0 0.0
    %180 = vmatprep.subr.mxu0 0.0
    %181 = vmatpush1.msra.mxu0 0.0
    %182 = vmatprep.subr.mxu0 0.0
    %183 = vmatpush1.msra.mxu0 0.0
    %184 = vmatprep.subr.mxu0 0.0
    %185 = vmatpush1.msra.mxu0 0.0
    %186 = vmatprep.mubr.f32.mxu0 0.0
    %v187 = vand.u32 %v88, 4294901760
    %v188 = vsub.f32 %v88, %v187
    %v189 = vand.u32 %v188, 4294901760
    %v190 = vsub.f32 %v188, %v189
    %v191 = vand.u32 %v190, 4294901760
    %192 = vmatmul.mubr.f32.gmra.mrb[0].mxu0 %v191
    %v193 = vpop.f32.mrb[0].mxu0
    %v194 = vadd.f32 0.0, %v193
    %v195 = vpop.f32.mrb[0].mxu0
    %196 = vmatprep.mubr.f32.mxu0 0.0
    %v197 = vand.u32 %v89, 4294901760
    %v198 = vsub.f32 %v89, %v197
    %v199 = vand.u32 %v198, 4294901760
    %v200 = vsub.f32 %v198, %v199
    %v201 = vand.u32 %v200, 4294901760
    %202 = vmatmul.mubr.f32.gmra.mrb[0].mxu0 %v201
    %v203 = vpop.f32.mrb[0].mxu0
    %v204 = vadd.f32 0.0, %v203
    %v205 = vpop.f32.mrb[0].mxu0
    %206 = vdwg.mxu0
    %207 = vmatprep.subr.mxu0 0.0
    %v208 = vand.u32 %v90, 4294901760
    %v209 = vsub.f32 %v90, %v208
    %v210 = vand.u32 %v209, 4294901760
    %v211 = vsub.f32 %v209, %v210
    %v212 = vand.u32 %v211, 4294901760
    %213 = vmatpush1.msra.mxu0 %v212
    %214 = vmatprep.subr.mxu0 0.0
    %v215 = vand.u32 %v91, 4294901760
    %v216 = vsub.f32 %v91, %v215
    %v217 = vand.u32 %v216, 4294901760
    %v218 = vsub.f32 %v216, %v217
    %v219 = vand.u32 %v218, 4294901760
    %220 = vmatpush1.msra.mxu0 %v219
    %221 = vmatprep.subr.mxu0 0.0
    %v222 = vand.u32 %v92, 4294901760
    %v223 = vsub.f32 %v92, %v222
    %v224 = vand.u32 %v223, 4294901760
    %v225 = vsub.f32 %v223, %v224
    %v226 = vand.u32 %v225, 4294901760
    %227 = vmatpush1.msra.mxu0 %v226
    %228 = vmatprep.subr.mxu0 0.0
    %v229 = vand.u32 %v93, 4294901760
    %v230 = vsub.f32 %v93, %v229
    %v231 = vand.u32 %v230, 4294901760
    %v232 = vsub.f32 %v230, %v231
    %v233 = vand.u32 %v232, 4294901760
    %234 = vmatpush1.msra.mxu0 %v233
    %235 = vmatprep.subr.mxu0 0.0
    %v236 = vand.u32 %v94, 4294901760
    %v237 = vsub.f32 %v94, %v236
    %v238 = vand.u32 %v237, 4294901760
    %v239 = vsub.f32 %v237, %v238
    %v240 = vand.u32 %v239, 4294901760
    %241 = vmatpush1.msra.mxu0 %v240
    %242 = vmatprep.subr.mxu0 0.0
    %v243 = vand.u32 %v95, 4294901760
    %v244 = vsub.f32 %v95, %v243
    %v245 = vand.u32 %v244, 4294901760
    %v246 = vsub.f32 %v244, %v245
    %v247 = vand.u32 %v246, 4294901760
    %248 = vmatpush1.msra.mxu0 %v247
    %249 = vmatprep.subr.mxu0 0.0
    %v250 = vand.u32 %v96, 4294901760
    %v251 = vsub.f32 %v96, %v250
    %v252 = vand.u32 %v251, 4294901760
    %v253 = vsub.f32 %v251, %v252
    %v254 = vand.u32 %v253, 4294901760
    %255 = vmatpush1.msra.mxu0 %v254
    %256 = vmatprep.subr.mxu0 0.0
    %v257 = vand.u32 %v97, 4294901760
    %v258 = vsub.f32 %v97, %v257
    %v259 = vand.u32 %v258, 4294901760
    %v260 = vsub.f32 %v258, %v259
    %v261 = vand.u32 %v260, 4294901760
    %262 = vmatpush1.msra.mxu0 %v261
    %263 = vmatprep.subr.mxu0 0.0
    %v264 = vand.u32 %v98, 4294901760
    %v265 = vsub.f32 %v98, %v264
    %v266 = vand.u32 %v265, 4294901760
    %v267 = vsub.f32 %v265, %v266
    %v268 = vand.u32 %v267, 4294901760
    %269 = vmatpush1.msra.mxu0 %v268
    %270 = vmatprep.subr.mxu0 0.0
    %v271 = vand.u32 %v99, 4294901760
    %v272 = vsub.f32 %v99, %v271
    %v273 = vand.u32 %v272, 4294901760
    %v274 = vsub.f32 %v272, %v273
    %v275 = vand.u32 %v274, 4294901760
    %276 = vmatpush1.msra.mxu0 %v275
    %277 = vmatprep.subr.mxu0 0.0
    %v278 = vand.u32 %v100, 4294901760
    %v279 = vsub.f32 %v100, %v278
    %v280 = vand.u32 %v279, 4294901760
    %v281 = vsub.f32 %v279, %v280
    %v282 = vand.u32 %v281, 4294901760
    %283 = vmatpush1.msra.mxu0 %v282
    %284 = vmatprep.subr.mxu0 0.0
    %v285 = vand.u32 %v101, 4294901760
    %v286 = vsub.f32 %v101, %v285
    %v287 = vand.u32 %v286, 4294901760
    %v288 = vsub.f32 %v286, %v287
    %v289 = vand.u32 %v288, 4294901760
    %290 = vmatpush1.msra.mxu0 %v289
    %291 = vmatprep.subr.mxu0 0.0
    %v292 = vand.u32 %v102, 4294901760
    %v293 = vsub.f32 %v102, %v292
    %v294 = vand.u32 %v293, 4294901760
    %v295 = vsub.f32 %v293, %v294
    %v296 = vand.u32 %v295, 4294901760
    %297 = vmatpush1.msra.mxu0 %v296
    %298 = vmatprep.subr.mxu0 0.0
    %v299 = vand.u32 %v103, 4294901760
    %v300 = vsub.f32 %v103, %v299
    %v301 = vand.u32 %v300, 4294901760
    %v302 = vsub.f32 %v300, %v301
    %v303 = vand.u32 %v302, 4294901760
    %304 = vmatpush1.msra.mxu0 %v303
    %305 = vmatprep.subr.mxu0 0.0
    %v306 = vand.u32 %v104, 4294901760
    %v307 = vsub.f32 %v104, %v306
    %v308 = vand.u32 %v307, 4294901760
    %v309 = vsub.f32 %v307, %v308
    %v310 = vand.u32 %v309, 4294901760
    %311 = vmatpush1.msra.mxu0 %v310
    %312 = vmatprep.subr.mxu0 0.0
    %v313 = vand.u32 %v105, 4294901760
    %v314 = vsub.f32 %v105, %v313
    %v315 = vand.u32 %v314, 4294901760
    %v316 = vsub.f32 %v314, %v315
    %v317 = vand.u32 %v316, 4294901760
    %318 = vmatpush1.msra.mxu0 %v317
    %319 = vmatprep.subr.mxu0 0.0
    %320 = vmatpush1.msra.mxu0 0.0
    %321 = vmatprep.subr.mxu0 0.0
    %322 = vmatpush1.msra.mxu0 0.0
    %323 = vmatprep.subr.mxu0 0.0
    %324 = vmatpush1.msra.mxu0 0.0
    %325 = vmatprep.subr.mxu0 0.0
    %326 = vmatpush1.msra.mxu0 0.0
    %327 = vmatprep.subr.mxu0 0.0
    %328 = vmatpush1.msra.mxu0 0.0
    %329 = vmatprep.subr.mxu0 0.0
    %330 = vmatpush1.msra.mxu0 0.0
    %331 = vmatprep.subr.mxu0 0.0
    %332 = vmatpush1.msra.mxu0 0.0
    %333 = vmatprep.subr.mxu0 0.0
    %334 = vmatpush1.msra.mxu0 0.0
    %335 = vmatprep.subr.mxu0 0.0
    %336 = vmatpush1.msra.mxu0 0.0
    %337 = vmatprep.subr.mxu0 0.0
    %338 = vmatpush1.msra.mxu0 0.0
    %339 = vmatprep.subr.mxu0 0.0
    %340 = vmatpush1.msra.mxu0 0.0
    %341 = vmatprep.subr.mxu0 0.0
    %342 = vmatpush1.msra.mxu0 0.0
    %343 = vmatprep.subr.mxu0 0.0
    %344 = vmatpush1.msra.mxu0 0.0
    %345 = vmatprep.subr.mxu0 0.0
    %346 = vmatpush1.msra.mxu0 0.0
    %347 = vmatprep.subr.mxu0 0.0
    %348 = vmatpush1.msra.mxu0 0.0
    %349 = vmatprep.subr.mxu0 0.0
    %350 = vmatpush1.msra.mxu0 0.0
    %351 = vmatprep.mubr.f32.mxu0 0.0
    %v352 = vand.u32 %v88, 4294901760
    %353 = vmatmul.mubr.f32.gmra.mrb[0].mxu0 %v352
    %v354 = vpop.f32.mrb[0].mxu0
    %v355 = vadd.f32 %v194, %v354
    %v356 = vpop.f32.mrb[0].mxu0
    %357 = vmatprep.mubr.f32.mxu0 0.0
    %v358 = vand.u32 %v89, 4294901760
    %359 = vmatmul.mubr.f32.gmra.mrb[0].mxu0 %v358
    %v360 = vpop.f32.mrb[0].mxu0
    %v361 = vadd.f32 %v204, %v360
    %v362 = vpop.f32.mrb[0].mxu0
    %363 = vdwg.mxu0
    %364 = vmatprep.subr.mxu0 0.0
    %v365 = vand.u32 %v90, 4294901760
    %v366 = vsub.f32 %v90, %v365
    %367 = vmatpush1.msra.mxu0 %v366
    %368 = vmatprep.subr.mxu0 0.0
    %v369 = vand.u32 %v91, 4294901760
    %v370 = vsub.f32 %v91, %v369
    %371 = vmatpush1.msra.mxu0 %v370
    %372 = vmatprep.subr.mxu0 0.0
    %v373 = vand.u32 %v92, 4294901760
    %v374 = vsub.f32 %v92, %v373
    %375 = vmatpush1.msra.mxu0 %v374
    %376 = vmatprep.subr.mxu0 0.0
    %v377 = vand.u32 %v93, 4294901760
    %v378 = vsub.f32 %v93, %v377
    %379 = vmatpush1.msra.mxu0 %v378
    %380 = vmatprep.subr.mxu0 0.0
    %v381 = vand.u32 %v94, 4294901760
    %v382 = vsub.f32 %v94, %v381
    %383 = vmatpush1.msra.mxu0 %v382
    %384 = vmatprep.subr.mxu0 0.0
    %v385 = vand.u32 %v95, 4294901760
    %v386 = vsub.f32 %v95, %v385
    %387 = vmatpush1.msra.mxu0 %v386
    %388 = vmatprep.subr.mxu0 0.0
    %v389 = vand.u32 %v96, 4294901760
    %v390 = vsub.f32 %v96, %v389
    %391 = vmatpush1.msra.mxu0 %v390
    %392 = vmatprep.subr.mxu0 0.0
    %v393 = vand.u32 %v97, 4294901760
    %v394 = vsub.f32 %v97, %v393
    %395 = vmatpush1.msra.mxu0 %v394
    %396 = vmatprep.subr.mxu0 0.0
    %v397 = vand.u32 %v98, 4294901760
    %v398 = vsub.f32 %v98, %v397
    %399 = vmatpush1.msra.mxu0 %v398
    %400 = vmatprep.subr.mxu0 0.0
    %v401 = vand.u32 %v99, 4294901760
    %v402 = vsub.f32 %v99, %v401
    %403 = vmatpush1.msra.mxu0 %v402
    %404 = vmatprep.subr.mxu0 0.0
    %v405 = vand.u32 %v100, 4294901760
    %v406 = vsub.f32 %v100, %v405
    %407 = vmatpush1.msra.mxu0 %v406
    %408 = vmatprep.subr.mxu0 0.0
    %v409 = vand.u32 %v101, 4294901760
    %v410 = vsub.f32 %v101, %v409
    %411 = vmatpush1.msra.mxu0 %v410
    %412 = vmatprep.subr.mxu0 0.0
    %v413 = vand.u32 %v102, 4294901760
    %v414 = vsub.f32 %v102, %v413
    %415 = vmatpush1.msra.mxu0 %v414
    %416 = vmatprep.subr.mxu0 0.0
    %v417 = vand.u32 %v103, 4294901760
    %v418 = vsub.f32 %v103, %v417
    %419 = vmatpush1.msra.mxu0 %v418
    %420 = vmatprep.subr.mxu0 0.0
    %v421 = vand.u32 %v104, 4294901760
    %v422 = vsub.f32 %v104, %v421
    %423 = vmatpush1.msra.mxu0 %v422
    %424 = vmatprep.subr.mxu0 0.0
    %v425 = vand.u32 %v105, 4294901760
    %v426 = vsub.f32 %v105, %v425
    %427 = vmatpush1.msra.mxu0 %v426
    %428 = vmatprep.subr.mxu0 0.0
    %429 = vmatpush1.msra.mxu0 0.0
    %430 = vmatprep.subr.mxu0 0.0
    %431 = vmatpush1.msra.mxu0 0.0
    %432 = vmatprep.subr.mxu0 0.0
    %433 = vmatpush1.msra.mxu0 0.0
    %434 = vmatprep.subr.mxu0 0.0
    %435 = vmatpush1.msra.mxu0 0.0
    %436 = vmatprep.subr.mxu0 0.0
    %437 = vmatpush1.msra.mxu0 0.0
    %438 = vmatprep.subr.mxu0 0.0
    %439 = vmatpush1.msra.mxu0 0.0
    %440 = vmatprep.subr.mxu0 0.0
    %441 = vmatpush1.msra.mxu0 0.0
    %442 = vmatprep.subr.mxu0 0.0
    %443 = vmatpush1.msra.mxu0 0.0
    %444 = vmatprep.subr.mxu0 0.0
    %445 = vmatpush1.msra.mxu0 0.0
    %446 = vmatprep.subr.mxu0 0.0
    %447 = vmatpush1.msra.mxu0 0.0
    %448 = vmatprep.subr.mxu0 0.0
    %449 = vmatpush1.msra.mxu0 0.0
    %450 = vmatprep.subr.mxu0 0.0
    %451 = vmatpush1.msra.mxu0 0.0
    %452 = vmatprep.subr.mxu0 0.0
    %453 = vmatpush1.msra.mxu0 0.0
    %454 = vmatprep.subr.mxu0 0.0
    %455 = vmatpush1.msra.mxu0 0.0
    %456 = vmatprep.subr.mxu0 0.0
    %457 = vmatpush1.msra.mxu0 0.0
    %458 = vmatprep.subr.mxu0 0.0
    %459 = vmatpush1.msra.mxu0 0.0
    %460 = vmatprep.mubr.f32.mxu0 0.0
    %v461 = vand.u32 %v88, 4294901760
    %v462 = vsub.f32 %v88, %v461
    %463 = vmatmul.mubr.f32.gmra.mrb[0].mxu0 %v462
    %v464 = vpop.f32.mrb[0].mxu0
    %v465 = vadd.f32 %v355, %v464
    %v466 = vpop.f32.mrb[0].mxu0
    %467 = vmatprep.mubr.f32.mxu0 0.0
    %v468 = vand.u32 %v89, 4294901760
    %v469 = vsub.f32 %v89, %v468
    %470 = vmatmul.mubr.f32.gmra.mrb[0].mxu0 %v469
    %v471 = vpop.f32.mrb[0].mxu0
    %v472 = vadd.f32 %v361, %v471
    %v473 = vpop.f32.mrb[0].mxu0
    %474 = vdwg.mxu0
    %475 = vmatprep.subr.mxu0 0.0
    %v476 = vand.u32 %v90, 4294901760
    %477 = vmatpush1.msra.mxu0 %v476
    %478 = vmatprep.subr.mxu0 0.0
    %v479 = vand.u32 %v91, 4294901760
    %480 = vmatpush1.msra.mxu0 %v479
    %481 = vmatprep.subr.mxu0 0.0
    %v482 = vand.u32 %v92, 4294901760
    %483 = vmatpush1.msra.mxu0 %v482
    %484 = vmatprep.subr.mxu0 0.0
    %v485 = vand.u32 %v93, 4294901760
    %486 = vmatpush1.msra.mxu0 %v485
    %487 = vmatprep.subr.mxu0 0.0
    %v488 = vand.u32 %v94, 4294901760
    %489 = vmatpush1.msra.mxu0 %v488
    %490 = vmatprep.subr.mxu0 0.0
    %v491 = vand.u32 %v95, 4294901760
    %492 = vmatpush1.msra.mxu0 %v491
    %493 = vmatprep.subr.mxu0 0.0
    %v494 = vand.u32 %v96, 4294901760
    %495 = vmatpush1.msra.mxu0 %v494
    %496 = vmatprep.subr.mxu0 0.0
    %v497 = vand.u32 %v97, 4294901760
    %498 = vmatpush1.msra.mxu0 %v497
    %499 = vmatprep.subr.mxu0 0.0
    %v500 = vand.u32 %v98, 4294901760
    %501 = vmatpush1.msra.mxu0 %v500
    %502 = vmatprep.subr.mxu0 0.0
    %v503 = vand.u32 %v99, 4294901760
    %504 = vmatpush1.msra.mxu0 %v503
    %505 = vmatprep.subr.mxu0 0.0
    %v506 = vand.u32 %v100, 4294901760
    %507 = vmatpush1.msra.mxu0 %v506
    %508 = vmatprep.subr.mxu0 0.0
    %v509 = vand.u32 %v101, 4294901760
    %510 = vmatpush1.msra.mxu0 %v509
    %511 = vmatprep.subr.mxu0 0.0
    %v512 = vand.u32 %v102, 4294901760
    %513 = vmatpush1.msra.mxu0 %v512
    %514 = vmatprep.subr.mxu0 0.0
    %v515 = vand.u32 %v103, 4294901760
    %516 = vmatpush1.msra.mxu0 %v515
    %517 = vmatprep.subr.mxu0 0.0
    %v518 = vand.u32 %v104, 4294901760
    %519 = vmatpush1.msra.mxu0 %v518
    %520 = vmatprep.subr.mxu0 0.0
    %v521 = vand.u32 %v105, 4294901760
    %522 = vmatpush1.msra.mxu0 %v521
    %523 = vmatprep.subr.mxu0 0.0
    %524 = vmatpush1.msra.mxu0 0.0
    %525 = vmatprep.subr.mxu0 0.0
    %526 = vmatpush1.msra.mxu0 0.0
    %527 = vmatprep.subr.mxu0 0.0
    %528 = vmatpush1.msra.mxu0 0.0
    %529 = vmatprep.subr.mxu0 0.0
    %530 = vmatpush1.msra.mxu0 0.0
    %531 = vmatprep.subr.mxu0 0.0
    %532 = vmatpush1.msra.mxu0 0.0
    %533 = vmatprep.subr.mxu0 0.0
    %534 = vmatpush1.msra.mxu0 0.0
    %535 = vmatprep.subr.mxu0 0.0
    %536 = vmatpush1.msra.mxu0 0.0
    %537 = vmatprep.subr.mxu0 0.0
    %538 = vmatpush1.msra.mxu0 0.0
    %539 = vmatprep.subr.mxu0 0.0
    %540 = vmatpush1.msra.mxu0 0.0
    %541 = vmatprep.subr.mxu0 0.0
    %542 = vmatpush1.msra.mxu0 0.0
    %543 = vmatprep.subr.mxu0 0.0
    %544 = vmatpush1.msra.mxu0 0.0
    %545 = vmatprep.subr.mxu0 0.0
    %546 = vmatpush1.msra.mxu0 0.0
    %547 = vmatprep.subr.mxu0 0.0
    %548 = vmatpush1.msra.mxu0 0.0
    %549 = vmatprep.subr.mxu0 0.0
    %550 = vmatpush1.msra.mxu0 0.0
    %551 = vmatprep.subr.mxu0 0.0
    %552 = vmatpush1.msra.mxu0 0.0
    %553 = vmatprep.subr.mxu0 0.0
    %554 = vmatpush1.msra.mxu0 0.0
    %555 = vmatprep.mubr.f32.mxu0 0.0
    %v556 = vand.u32 %v88, 4294901760
    %v557 = vsub.f32 %v88, %v556
    %v558 = vand.u32 %v557, 4294901760
    %559 = vmatmul.mubr.f32.gmra.mrb[0].mxu0 %v558
    %v560 = vpop.f32.mrb[0].mxu0
    %v561 = vadd.f32 %v465, %v560
    %v562 = vpop.f32.mrb[0].mxu0
    %563 = vmatprep.mubr.f32.mxu0 0.0
    %v564 = vand.u32 %v89, 4294901760
    %v565 = vsub.f32 %v89, %v564
    %v566 = vand.u32 %v565, 4294901760
    %567 = vmatmul.mubr.f32.gmra.mrb[0].mxu0 %v566
    %v568 = vpop.f32.mrb[0].mxu0
    %v569 = vadd.f32 %v472, %v568
    %v570 = vpop.f32.mrb[0].mxu0
    %571 = vdwg.mxu0
    %572 = vmatprep.subr.mxu0 0.0
    %v573 = vand.u32 %v90, 4294901760
    %v574 = vsub.f32 %v90, %v573
    %v575 = vand.u32 %v574, 4294901760
    %576 = vmatpush1.msra.mxu0 %v575
    %577 = vmatprep.subr.mxu0 0.0
    %v578 = vand.u32 %v91, 4294901760
    %v579 = vsub.f32 %v91, %v578
    %v580 = vand.u32 %v579, 4294901760
    %581 = vmatpush1.msra.mxu0 %v580
    %582 = vmatprep.subr.mxu0 0.0
    %v583 = vand.u32 %v92, 4294901760
    %v584 = vsub.f32 %v92, %v583
    %v585 = vand.u32 %v584, 4294901760
    %586 = vmatpush1.msra.mxu0 %v585
    %587 = vmatprep.subr.mxu0 0.0
    %v588 = vand.u32 %v93, 4294901760
    %v589 = vsub.f32 %v93, %v588
    %v590 = vand.u32 %v589, 4294901760
    %591 = vmatpush1.msra.mxu0 %v590
    %592 = vmatprep.subr.mxu0 0.0
    %v593 = vand.u32 %v94, 4294901760
    %v594 = vsub.f32 %v94, %v593
    %v595 = vand.u32 %v594, 4294901760
    %596 = vmatpush1.msra.mxu0 %v595
    %597 = vmatprep.subr.mxu0 0.0
    %v598 = vand.u32 %v95, 4294901760
    %v599 = vsub.f32 %v95, %v598
    %v600 = vand.u32 %v599, 4294901760
    %601 = vmatpush1.msra.mxu0 %v600
    %602 = vmatprep.subr.mxu0 0.0
    %v603 = vand.u32 %v96, 4294901760
    %v604 = vsub.f32 %v96, %v603
    %v605 = vand.u32 %v604, 4294901760
    %606 = vmatpush1.msra.mxu0 %v605
    %607 = vmatprep.subr.mxu0 0.0
    %v608 = vand.u32 %v97, 4294901760
    %v609 = vsub.f32 %v97, %v608
    %v610 = vand.u32 %v609, 4294901760
    %611 = vmatpush1.msra.mxu0 %v610
    %612 = vmatprep.subr.mxu0 0.0
    %v613 = vand.u32 %v98, 4294901760
    %v614 = vsub.f32 %v98, %v613
    %v615 = vand.u32 %v614, 4294901760
    %616 = vmatpush1.msra.mxu0 %v615
    %617 = vmatprep.subr.mxu0 0.0
    %v618 = vand.u32 %v99, 4294901760
    %v619 = vsub.f32 %v99, %v618
    %v620 = vand.u32 %v619, 4294901760
    %621 = vmatpush1.msra.mxu0 %v620
    %622 = vmatprep.subr.mxu0 0.0
    %v623 = vand.u32 %v100, 4294901760
    %v624 = vsub.f32 %v100, %v623
    %v625 = vand.u32 %v624, 4294901760
    %626 = vmatpush1.msra.mxu0 %v625
    %627 = vmatprep.subr.mxu0 0.0
    %v628 = vand.u32 %v101, 4294901760
    %v629 = vsub.f32 %v101, %v628
    %v630 = vand.u32 %v629, 4294901760
    %631 = vmatpush1.msra.mxu0 %v630
    %632 = vmatprep.subr.mxu0 0.0
    %v633 = vand.u32 %v102, 4294901760
    %v634 = vsub.f32 %v102, %v633
    %v635 = vand.u32 %v634, 4294901760
    %636 = vmatpush1.msra.mxu0 %v635
    %637 = vmatprep.subr.mxu0 0.0
    %v638 = vand.u32 %v103, 4294901760
    %v639 = vsub.f32 %v103, %v638
    %v640 = vand.u32 %v639, 4294901760
    %641 = vmatpush1.msra.mxu0 %v640
    %642 = vmatprep.subr.mxu0 0.0
    %v643 = vand.u32 %v104, 4294901760
    %v644 = vsub.f32 %v104, %v643
    %v645 = vand.u32 %v644, 4294901760
    %646 = vmatpush1.msra.mxu0 %v645
    %647 = vmatprep.subr.mxu0 0.0
    %v648 = vand.u32 %v105, 4294901760
    %v649 = vsub.f32 %v105, %v648
    %v650 = vand.u32 %v649, 4294901760
    %651 = vmatpush1.msra.mxu0 %v650
    %652 = vmatprep.subr.mxu0 0.0
    %653 = vmatpush1.msra.mxu0 0.0
    %654 = vmatprep.subr.mxu0 0.0
    %655 = vmatpush1.msra.mxu0 0.0
    %656 = vmatprep.subr.mxu0 0.0
    %657 = vmatpush1.msra.mxu0 0.0
    %658 = vmatprep.subr.mxu0 0.0
    %659 = vmatpush1.msra.mxu0 0.0
    %660 = vmatprep.subr.mxu0 0.0
    %661 = vmatpush1.msra.mxu0 0.0
    %662 = vmatprep.subr.mxu0 0.0
    %663 = vmatpush1.msra.mxu0 0.0
    %664 = vmatprep.subr.mxu0 0.0
    %665 = vmatpush1.msra.mxu0 0.0
    %666 = vmatprep.subr.mxu0 0.0
    %667 = vmatpush1.msra.mxu0 0.0
    %668 = vmatprep.subr.mxu0 0.0
    %669 = vmatpush1.msra.mxu0 0.0
    %670 = vmatprep.subr.mxu0 0.0
    %671 = vmatpush1.msra.mxu0 0.0
    %672 = vmatprep.subr.mxu0 0.0
    %673 = vmatpush1.msra.mxu0 0.0
    %674 = vmatprep.subr.mxu0 0.0
    %675 = vmatpush1.msra.mxu0 0.0
    %676 = vmatprep.subr.mxu0 0.0
    %677 = vmatpush1.msra.mxu0 0.0
    %678 = vmatprep.subr.mxu0 0.0
    %679 = vmatpush1.msra.mxu0 0.0
    %680 = vmatprep.subr.mxu0 0.0
    %681 = vmatpush1.msra.mxu0 0.0
    %682 = vmatprep.subr.mxu0 0.0
    %683 = vmatpush1.msra.mxu0 0.0
    %684 = vmatprep.mubr.f32.mxu0 0.0
    %v685 = vand.u32 %v88, 4294901760
    %686 = vmatmul.mubr.f32.gmra.mrb[0].mxu0 %v685
    %v687 = vpop.f32.mrb[0].mxu0
    %v688 = vadd.f32 %v561, %v687
    %v689 = vpop.f32.mrb[0].mxu0
    %690 = vmatprep.mubr.f32.mxu0 0.0
    %v691 = vand.u32 %v89, 4294901760
    %692 = vmatmul.mubr.f32.gmra.mrb[0].mxu0 %v691
    %v693 = vpop.f32.mrb[0].mxu0
    %v694 = vadd.f32 %v569, %v693
    %v695 = vpop.f32.mrb[0].mxu0
    %696 = vdwg.mxu0
    %697 = vmatprep.subr.mxu0 0.0
    %v698 = vand.u32 %v90, 4294901760
    %699 = vmatpush1.msra.mxu0 %v698
    %700 = vmatprep.subr.mxu0 0.0
    %v701 = vand.u32 %v91, 4294901760
    %702 = vmatpush1.msra.mxu0 %v701
    %703 = vmatprep.subr.mxu0 0.0
    %v704 = vand.u32 %v92, 4294901760
    %705 = vmatpush1.msra.mxu0 %v704
    %706 = vmatprep.subr.mxu0 0.0
    %v707 = vand.u32 %v93, 4294901760
    %708 = vmatpush1.msra.mxu0 %v707
    %709 = vmatprep.subr.mxu0 0.0
    %v710 = vand.u32 %v94, 4294901760
    %711 = vmatpush1.msra.mxu0 %v710
    %712 = vmatprep.subr.mxu0 0.0
    %v713 = vand.u32 %v95, 4294901760
    %714 = vmatpush1.msra.mxu0 %v713
    %715 = vmatprep.subr.mxu0 0.0
    %v716 = vand.u32 %v96, 4294901760
    %717 = vmatpush1.msra.mxu0 %v716
    %718 = vmatprep.subr.mxu0 0.0
    %v719 = vand.u32 %v97, 4294901760
    %720 = vmatpush1.msra.mxu0 %v719
    %721 = vmatprep.subr.mxu0 0.0
    %v722 = vand.u32 %v98, 4294901760
    %723 = vmatpush1.msra.mxu0 %v722
    %724 = vmatprep.subr.mxu0 0.0
    %v725 = vand.u32 %v99, 4294901760
    %726 = vmatpush1.msra.mxu0 %v725
    %727 = vmatprep.subr.mxu0 0.0
    %v728 = vand.u32 %v100, 4294901760
    %729 = vmatpush1.msra.mxu0 %v728
    %730 = vmatprep.subr.mxu0 0.0
    %v731 = vand.u32 %v101, 4294901760
    %732 = vmatpush1.msra.mxu0 %v731
    %733 = vmatprep.subr.mxu0 0.0
    %v734 = vand.u32 %v102, 4294901760
    %735 = vmatpush1.msra.mxu0 %v734
    %736 = vmatprep.subr.mxu0 0.0
    %v737 = vand.u32 %v103, 4294901760
    %738 = vmatpush1.msra.mxu0 %v737
    %739 = vmatprep.subr.mxu0 0.0
    %v740 = vand.u32 %v104, 4294901760
    %741 = vmatpush1.msra.mxu0 %v740
    %742 = vmatprep.subr.mxu0 0.0
    %v743 = vand.u32 %v105, 4294901760
    %744 = vmatpush1.msra.mxu0 %v743
    %745 = vmatprep.subr.mxu0 0.0
    %746 = vmatpush1.msra.mxu0 0.0
    %747 = vmatprep.subr.mxu0 0.0
    %748 = vmatpush1.msra.mxu0 0.0
    %749 = vmatprep.subr.mxu0 0.0
    %750 = vmatpush1.msra.mxu0 0.0
    %751 = vmatprep.subr.mxu0 0.0
    %752 = vmatpush1.msra.mxu0 0.0
    %753 = vmatprep.subr.mxu0 0.0
    %754 = vmatpush1.msra.mxu0 0.0
    %755 = vmatprep.subr.mxu0 0.0
    %756 = vmatpush1.msra.mxu0 0.0
    %757 = vmatprep.subr.mxu0 0.0
    %758 = vmatpush1.msra.mxu0 0.0
    %759 = vmatprep.subr.mxu0 0.0
    %760 = vmatpush1.msra.mxu0 0.0
    %761 = vmatprep.subr.mxu0 0.0
    %762 = vmatpush1.msra.mxu0 0.0
    %763 = vmatprep.subr.mxu0 0.0
    %764 = vmatpush1.msra.mxu0 0.0
    %765 = vmatprep.subr.mxu0 0.0
    %766 = vmatpush1.msra.mxu0 0.0
    %767 = vmatprep.subr.mxu0 0.0
    %768 = vmatpush1.msra.mxu0 0.0
    %769 = vmatprep.subr.mxu0 0.0
    %770 = vmatpush1.msra.mxu0 0.0
    %771 = vmatprep.subr.mxu0 0.0
    %772 = vmatpush1.msra.mxu0 0.0
    %773 = vmatprep.subr.mxu0 0.0
    %774 = vmatpush1.msra.mxu0 0.0
    %775 = vmatprep.subr.mxu0 0.0
    %776 = vmatpush1.msra.mxu0 0.0
    %777 = vmatprep.mubr.f32.mxu0 0.0
    %v778 = vand.u32 %v88, 4294901760
    %779 = vmatmul.mubr.f32.gmra.mrb[0].mxu0 %v778
    %v780 = vpop.f32.mrb[0].mxu0
    %v781 = vadd.f32 %v688, %v780
    %v782 = vpop.f32.mrb[0].mxu0
    %783 = vmatprep.mubr.f32.mxu0 0.0
    %v784 = vand.u32 %v89, 4294901760
    %785 = vmatmul.mubr.f32.gmra.mrb[0].mxu0 %v784
    %v786 = vpop.f32.mrb[0].mxu0
    %v787 = vadd.f32 %v694, %v786
    %v788 = vpop.f32.mrb[0].mxu0
    %789 = vdwg.mxu0
    %790 = vst [vmem:[#allocation5] sm:$0xff] %v781
    %791 = vst [vmem:[#allocation5 + $0x8] sm:$0xff] %v787
    // Predicated region
    $region14: #{tpu_custom_call.1} parent=1 // pred_check
      _
    $region15: #{tpu_custom_call.1} parent=1 // pred_check_branch
      %793 = sbr.rel (0) target = $region17
    $region16: #{tpu_custom_call.1} parent=1 // pred_region
      %s795 = ssub.s32 256, 256
      %796 = vsyncadd [#allocation4], %s795
      %s797 = sshll.u32 [#allocation5], 4
      %s798 = int_to_ptr.vmem [resolvable:$true] %s797
      %803 = dma.vmem_to_hbm [thread:$0]  %s798, 256, %s2, [#allocation4], 128, 128, 8
    $region17: #{tpu_custom_call.1} parent=1 // pred_fallthru
      _
    // Predicated region
    $region18: #{tpu_custom_call.1} parent=1 // pred_check
      _
    $region19: #{tpu_custom_call.1} parent=1 // pred_check_branch
      %805 = sbr.rel (0) target = $region21
    $region20: #{tpu_custom_call.1} parent=1 // pred_region
      %806 = dma.done [#allocation4], 256
    $region21: #{tpu_custom_call.1} parent=1 // pred_fallthru
      _
    %807 = vsyncpa [#allocation3], 1
    %808 = vsyncpa [#allocation4], 1

// kernel: tpu_custom_call.1
$region0: #{tpu_custom_call.1}
  #allocation0 [shape = 'u32[]', space=smem, size = 0x4, offset = 0x4, fixed_abs, tag = 'smem constant byte address 0x4 - core index']
  #allocation1 [shape = 'u32[144,128]{1,0:T(1,128)}', space=vmem, size = 0x12000, scoped, tag = 'internal scratch']
  %s0 = inlined_call_operand.vmem [shape: s32[16,5], index: 0, kind: input, shape index: {}]
  %s1 = inlined_call_operand.hbm [shape: f32[128,128], index: 1, kind: input, shape index: {}]
  %s2 = inlined_call_operand.hbm [shape: f32[16,128], index: 2, kind: output, shape index: {}]
  %s3 = sld [smem:[#allocation0]]
  $region22: #{tpu_custom_call.1} parent=0
    _
  %s5 = ssub.s32 1, %s3
  %s6 = scalar_select 0, %s5, %s3
  $region1: #{tpu_custom_call.1} parent=0
    #allocation2 [shape = 'u8[65536]{0}', space=vmem, size = 0x10000, scoped, tag = 'input window, operand 1, single buffered']
    #allocation3 [shape = 's32[1]{0}', space=sflag, size = 0x4, scoped, tag = 'scoped memory for tpu_custom_call.1']
    #allocation4 [shape = 's32[1]{0}', space=sflag, size = 0x4, scoped, tag = 'scoped memory for tpu_custom_call.1']
    #allocation5 [shape = 'u8[8192]{0}', space=vmem, size = 0x2000, scoped, tag = 'output window, operand 0, single buffered']
    %7 = vsyncpa [#allocation3], 0
    %8 = vsyncpa [#allocation4], 0
    // Predicated region
    $region2: #{tpu_custom_call.1} parent=1 // pred_check
      _
    $region3: #{tpu_custom_call.1} parent=1 // pred_check_branch
      %10 = sbr.rel (0) target = $region5
    $region4: #{tpu_custom_call.1} parent=1 // pred_region
      _
    $region5: #{tpu_custom_call.1} parent=1 // pred_fallthru
      _
    // Predicated region
    $region6: #{tpu_custom_call.1} parent=1 // pred_check
      _
    $region7: #{tpu_custom_call.1} parent=1 // pred_check_branch
      %12 = sbr.rel (0) target = $region9
    $region8: #{tpu_custom_call.1} parent=1 // pred_region
      %s14 = ssub.s32 2048, 2048
      %15 = vsyncadd [#allocation3], %s14
      %s16 = sshll.u32 [#allocation2], 4
      %s17 = int_to_ptr.vmem [resolvable:$true] %s16
      %22 = dma.hbm_to_vmem [thread:$0]  %s1, 2048, %s17, [#allocation3], 128, 128, 8
    $region9: #{tpu_custom_call.1} parent=1 // pred_fallthru
      _
    // Predicated region
    $region10: #{tpu_custom_call.1} parent=1 // pred_check
      _
    $region11: #{tpu_custom_call.1} parent=1 // pred_check_branch
      %24 = sbr.rel (0) target = $region13
    $region12: #{tpu_custom_call.1} parent=1 // pred_region
      %25 = dma.done [#allocation3], 2048
    $region13: #{tpu_custom_call.1} parent=1 // pred_fallthru
      _
    %v26 = vld [vmem:[%s0] sm:$0xff]
    %v27 = vld [vmem:[%s0 + $0x8] sm:$0xff]
    %v28 = vlaneseq
    %v29 = vand.u32 %v28, 127
    %v30 = vadd.s32 %v26, 67
    %v31 = vadd.s32 %v27, 67
    %32 = vset.pattern.permute.xlu0 0
    %33 = vperm.xlu0 %32, %v30
    %v34 = vpop.permute.xlu0 %33
    %35 = vset.pattern.permute.xlu0 0
    %36 = vperm.xlu0 %35, %v31
    %v37 = vpop.permute.xlu0 %36
    %vm38 = vcmp.eq.s32.totalorder %v34, %v29
    %vm39 = vcmp.eq.s32.totalorder %v37, %v29
    %v40 = vadd.s32 %v26, 35
    %v41 = vadd.s32 %v27, 35
    %42 = vset.pattern.permute.xlu0 1
    %43 = vperm.xlu0 %42, %v40
    %v44 = vpop.permute.xlu0 %43
    %45 = vset.pattern.permute.xlu0 1
    %46 = vperm.xlu0 %45, %v41
    %v47 = vpop.permute.xlu0 %46
    %vm48 = vcmp.eq.s32.totalorder %v44, %v29
    %vm49 = vcmp.eq.s32.totalorder %v47, %v29
    %vm50 = vmor %vm38, %vm48
    %vm51 = vmor %vm39, %vm49
    %v52 = vadd.s32 %v26, 28
    %v53 = vadd.s32 %v27, 28
    %54 = vset.pattern.permute.xlu0 2
    %55 = vperm.xlu0 %54, %v52
    %v56 = vpop.permute.xlu0 %55
    %57 = vset.pattern.permute.xlu0 2
    %58 = vperm.xlu0 %57, %v53
    %v59 = vpop.permute.xlu0 %58
    %vm60 = vcmp.eq.s32.totalorder %v56, %v29
    %vm61 = vcmp.eq.s32.totalorder %v59, %v29
    %vm62 = vmor %vm50, %vm60
    %vm63 = vmor %vm51, %vm61
    %v64 = vadd.s32 %v26, 4
    %v65 = vadd.s32 %v27, 4
    %66 = vset.pattern.permute.xlu0 3
    %67 = vperm.xlu0 %66, %v64
    %v68 = vpop.permute.xlu0 %67
    %69 = vset.pattern.permute.xlu0 3
    %70 = vperm.xlu0 %69, %v65
    %v71 = vpop.permute.xlu0 %70
    %vm72 = vcmp.eq.s32.totalorder %v68, %v29
    %vm73 = vcmp.eq.s32.totalorder %v71, %v29
    %vm74 = vmor %vm62, %vm72
    %vm75 = vmor %vm63, %vm73
    %76 = vset.pattern.permute.xlu0 4
    %77 = vperm.xlu0 %76, %v26
    %v78 = vpop.permute.xlu0 %77
    %79 = vset.pattern.permute.xlu0 4
    %80 = vperm.xlu0 %79, %v27
    %v81 = vpop.permute.xlu0 %80
    %vm82 = vcmp.eq.s32.totalorder %v78, %v29
    %vm83 = vcmp.eq.s32.totalorder %v81, %v29
    %vm84 = vmor %vm74, %vm82
    %vm85 = vmor %vm75, %vm83
    %v86 = vsel %vm84, 1, 0
    %v87 = vsel %vm85, 1, 0
    %v88 = vcvt.s32.f32 %v86
    %v89 = vcvt.s32.f32 %v87
    %v90 = vld [vmem:[#allocation2] sm:$0xff]
    %v91 = vld [vmem:[#allocation2 + $0x8] sm:$0xff]
    %v92 = vld [vmem:[#allocation2 + $0x10] sm:$0xff]
    %v93 = vld [vmem:[#allocation2 + $0x18] sm:$0xff]
    %v94 = vld [vmem:[#allocation2 + $0x20] sm:$0xff]
    %v95 = vld [vmem:[#allocation2 + $0x28] sm:$0xff]
    %v96 = vld [vmem:[#allocation2 + $0x30] sm:$0xff]
    %v97 = vld [vmem:[#allocation2 + $0x38] sm:$0xff]
    %v98 = vld [vmem:[#allocation2 + $0x40] sm:$0xff]
    %v99 = vld [vmem:[#allocation2 + $0x48] sm:$0xff]
    %v100 = vld [vmem:[#allocation2 + $0x50] sm:$0xff]
    %v101 = vld [vmem:[#allocation2 + $0x58] sm:$0xff]
    %v102 = vld [vmem:[#allocation2 + $0x60] sm:$0xff]
    %v103 = vld [vmem:[#allocation2 + $0x68] sm:$0xff]
    %v104 = vld [vmem:[#allocation2 + $0x70] sm:$0xff]
    %v105 = vld [vmem:[#allocation2 + $0x78] sm:$0xff]
    %106 = vmatprep.subr.mxu0 0.0
    %v107 = vand.u32 %v90, 4294901760
    %108 = vmatpush1.msra.mxu0 %v107
    %109 = vmatprep.subr.mxu0 0.0
    %v110 = vand.u32 %v91, 4294901760
    %111 = vmatpush1.msra.mxu0 %v110
    %112 = vmatprep.subr.mxu0 0.0
    %v113 = vand.u32 %v92, 4294901760
    %114 = vmatpush1.msra.mxu0 %v113
    %115 = vmatprep.subr.mxu0 0.0
    %v116 = vand.u32 %v93, 4294901760
    %117 = vmatpush1.msra.mxu0 %v116
    %118 = vmatprep.subr.mxu0 0.0
    %v119 = vand.u32 %v94, 4294901760
    %120 = vmatpush1.msra.mxu0 %v119
    %121 = vmatprep.subr.mxu0 0.0
    %v122 = vand.u32 %v95, 4294901760
    %123 = vmatpush1.msra.mxu0 %v122
    %124 = vmatprep.subr.mxu0 0.0
    %v125 = vand.u32 %v96, 4294901760
    %126 = vmatpush1.msra.mxu0 %v125
    %127 = vmatprep.subr.mxu0 0.0
    %v128 = vand.u32 %v97, 4294901760
    %129 = vmatpush1.msra.mxu0 %v128
    %130 = vmatprep.subr.mxu0 0.0
    %v131 = vand.u32 %v98, 4294901760
    %132 = vmatpush1.msra.mxu0 %v131
    %133 = vmatprep.subr.mxu0 0.0
    %v134 = vand.u32 %v99, 4294901760
    %135 = vmatpush1.msra.mxu0 %v134
    %136 = vmatprep.subr.mxu0 0.0
    %v137 = vand.u32 %v100, 4294901760
    %138 = vmatpush1.msra.mxu0 %v137
    %139 = vmatprep.subr.mxu0 0.0
    %v140 = vand.u32 %v101, 4294901760
    %141 = vmatpush1.msra.mxu0 %v140
    %142 = vmatprep.subr.mxu0 0.0
    %v143 = vand.u32 %v102, 4294901760
    %144 = vmatpush1.msra.mxu0 %v143
    %145 = vmatprep.subr.mxu0 0.0
    %v146 = vand.u32 %v103, 4294901760
    %147 = vmatpush1.msra.mxu0 %v146
    %148 = vmatprep.subr.mxu0 0.0
    %v149 = vand.u32 %v104, 4294901760
    %150 = vmatpush1.msra.mxu0 %v149
    %151 = vmatprep.subr.mxu0 0.0
    %v152 = vand.u32 %v105, 4294901760
    %153 = vmatpush1.msra.mxu0 %v152
    %154 = vmatprep.subr.mxu0 0.0
    %155 = vmatpush1.msra.mxu0 0.0
    %156 = vmatprep.subr.mxu0 0.0
    %157 = vmatpush1.msra.mxu0 0.0
    %158 = vmatprep.subr.mxu0 0.0
    %159 = vmatpush1.msra.mxu0 0.0
    %160 = vmatprep.subr.mxu0 0.0
    %161 = vmatpush1.msra.mxu0 0.0
    %162 = vmatprep.subr.mxu0 0.0
    %163 = vmatpush1.msra.mxu0 0.0
    %164 = vmatprep.subr.mxu0 0.0
    %165 = vmatpush1.msra.mxu0 0.0
    %166 = vmatprep.subr.mxu0 0.0
    %167 = vmatpush1.msra.mxu0 0.0
    %168 = vmatprep.subr.mxu0 0.0
    %169 = vmatpush1.msra.mxu0 0.0
    %170 = vmatprep.subr.mxu0 0.0
    %171 = vmatpush1.msra.mxu0 0.0
    %172 = vmatprep.subr.mxu0 0.0
    %173 = vmatpush1.msra.mxu0 0.0
    %174 = vmatprep.subr.mxu0 0.0
    %175 = vmatpush1.msra.mxu0 0.0
    %176 = vmatprep.subr.mxu0 0.0
    %177 = vmatpush1.msra.mxu0 0.0
    %178 = vmatprep.subr.mxu0 0.0
    %179 = vmatpush1.msra.mxu0 0.0
    %180 = vmatprep.subr.mxu0 0.0
    %181 = vmatpush1.msra.mxu0 0.0
    %182 = vmatprep.subr.mxu0 0.0
    %183 = vmatpush1.msra.mxu0 0.0
    %184 = vmatprep.subr.mxu0 0.0
    %185 = vmatpush1.msra.mxu0 0.0
    %186 = vmatprep.mubr.f32.mxu0 0.0
    %v187 = vand.u32 %v88, 4294901760
    %v188 = vsub.f32 %v88, %v187
    %v189 = vand.u32 %v188, 4294901760
    %v190 = vsub.f32 %v188, %v189
    %v191 = vand.u32 %v190, 4294901760
    %192 = vmatmul.mubr.f32.gmra.mrb[0].mxu0 %v191
    %v193 = vpop.f32.mrb[0].mxu0
    %v194 = vadd.f32 0.0, %v193
    %v195 = vpop.f32.mrb[0].mxu0
    %196 = vmatprep.mubr.f32.mxu0 0.0
    %v197 = vand.u32 %v89, 4294901760
    %v198 = vsub.f32 %v89, %v197
    %v199 = vand.u32 %v198, 4294901760
    %v200 = vsub.f32 %v198, %v199
    %v201 = vand.u32 %v200, 4294901760
    %202 = vmatmul.mubr.f32.gmra.mrb[0].mxu0 %v201
    %v203 = vpop.f32.mrb[0].mxu0
    %v204 = vadd.f32 0.0, %v203
    %v205 = vpop.f32.mrb[0].mxu0
    %206 = vdwg.mxu0
    %207 = vmatprep.subr.mxu0 0.0
    %v208 = vand.u32 %v90, 4294901760
    %v209 = vsub.f32 %v90, %v208
    %v210 = vand.u32 %v209, 4294901760
    %v211 = vsub.f32 %v209, %v210
    %v212 = vand.u32 %v211, 4294901760
    %213 = vmatpush1.msra.mxu0 %v212
    %214 = vmatprep.subr.mxu0 0.0
    %v215 = vand.u32 %v91, 4294901760
    %v216 = vsub.f32 %v91, %v215
    %v217 = vand.u32 %v216, 4294901760
    %v218 = vsub.f32 %v216, %v217
    %v219 = vand.u32 %v218, 4294901760
    %220 = vmatpush1.msra.mxu0 %v219
    %221 = vmatprep.subr.mxu0 0.0
    %v222 = vand.u32 %v92, 4294901760
    %v223 = vsub.f32 %v92, %v222
    %v224 = vand.u32 %v223, 4294901760
    %v225 = vsub.f32 %v223, %v224
    %v226 = vand.u32 %v225, 4294901760
    %227 = vmatpush1.msra.mxu0 %v226
    %228 = vmatprep.subr.mxu0 0.0
    %v229 = vand.u32 %v93, 4294901760
    %v230 = vsub.f32 %v93, %v229
    %v231 = vand.u32 %v230, 4294901760
    %v232 = vsub.f32 %v230, %v231
    %v233 = vand.u32 %v232, 4294901760
    %234 = vmatpush1.msra.mxu0 %v233
    %235 = vmatprep.subr.mxu0 0.0
    %v236 = vand.u32 %v94, 4294901760
    %v237 = vsub.f32 %v94, %v236
    %v238 = vand.u32 %v237, 4294901760
    %v239 = vsub.f32 %v237, %v238
    %v240 = vand.u32 %v239, 4294901760
    %241 = vmatpush1.msra.mxu0 %v240
    %242 = vmatprep.subr.mxu0 0.0
    %v243 = vand.u32 %v95, 4294901760
    %v244 = vsub.f32 %v95, %v243
    %v245 = vand.u32 %v244, 4294901760
    %v246 = vsub.f32 %v244, %v245
    %v247 = vand.u32 %v246, 4294901760
    %248 = vmatpush1.msra.mxu0 %v247
    %249 = vmatprep.subr.mxu0 0.0
    %v250 = vand.u32 %v96, 4294901760
    %v251 = vsub.f32 %v96, %v250
    %v252 = vand.u32 %v251, 4294901760
    %v253 = vsub.f32 %v251, %v252
    %v254 = vand.u32 %v253, 4294901760
    %255 = vmatpush1.msra.mxu0 %v254
    %256 = vmatprep.subr.mxu0 0.0
    %v257 = vand.u32 %v97, 4294901760
    %v258 = vsub.f32 %v97, %v257
    %v259 = vand.u32 %v258, 4294901760
    %v260 = vsub.f32 %v258, %v259
    %v261 = vand.u32 %v260, 4294901760
    %262 = vmatpush1.msra.mxu0 %v261
    %263 = vmatprep.subr.mxu0 0.0
    %v264 = vand.u32 %v98, 4294901760
    %v265 = vsub.f32 %v98, %v264
    %v266 = vand.u32 %v265, 4294901760
    %v267 = vsub.f32 %v265, %v266
    %v268 = vand.u32 %v267, 4294901760
    %269 = vmatpush1.msra.mxu0 %v268
    %270 = vmatprep.subr.mxu0 0.0
    %v271 = vand.u32 %v99, 4294901760
    %v272 = vsub.f32 %v99, %v271
    %v273 = vand.u32 %v272, 4294901760
    %v274 = vsub.f32 %v272, %v273
    %v275 = vand.u32 %v274, 4294901760
    %276 = vmatpush1.msra.mxu0 %v275
    %277 = vmatprep.subr.mxu0 0.0
    %v278 = vand.u32 %v100, 4294901760
    %v279 = vsub.f32 %v100, %v278
    %v280 = vand.u32 %v279, 4294901760
    %v281 = vsub.f32 %v279, %v280
    %v282 = vand.u32 %v281, 4294901760
    %283 = vmatpush1.msra.mxu0 %v282
    %284 = vmatprep.subr.mxu0 0.0
    %v285 = vand.u32 %v101, 4294901760
    %v286 = vsub.f32 %v101, %v285
    %v287 = vand.u32 %v286, 4294901760
    %v288 = vsub.f32 %v286, %v287
    %v289 = vand.u32 %v288, 4294901760
    %290 = vmatpush1.msra.mxu0 %v289
    %291 = vmatprep.subr.mxu0 0.0
    %v292 = vand.u32 %v102, 4294901760
    %v293 = vsub.f32 %v102, %v292
    %v294 = vand.u32 %v293, 4294901760
    %v295 = vsub.f32 %v293, %v294
    %v296 = vand.u32 %v295, 4294901760
    %297 = vmatpush1.msra.mxu0 %v296
    %298 = vmatprep.subr.mxu0 0.0
    %v299 = vand.u32 %v103, 4294901760
    %v300 = vsub.f32 %v103, %v299
    %v301 = vand.u32 %v300, 4294901760
    %v302 = vsub.f32 %v300, %v301
    %v303 = vand.u32 %v302, 4294901760
    %304 = vmatpush1.msra.mxu0 %v303
    %305 = vmatprep.subr.mxu0 0.0
    %v306 = vand.u32 %v104, 4294901760
    %v307 = vsub.f32 %v104, %v306
    %v308 = vand.u32 %v307, 4294901760
    %v309 = vsub.f32 %v307, %v308
    %v310 = vand.u32 %v309, 4294901760
    %311 = vmatpush1.msra.mxu0 %v310
    %312 = vmatprep.subr.mxu0 0.0
    %v313 = vand.u32 %v105, 4294901760
    %v314 = vsub.f32 %v105, %v313
    %v315 = vand.u32 %v314, 4294901760
    %v316 = vsub.f32 %v314, %v315
    %v317 = vand.u32 %v316, 4294901760
    %318 = vmatpush1.msra.mxu0 %v317
    %319 = vmatprep.subr.mxu0 0.0
    %320 = vmatpush1.msra.mxu0 0.0
    %321 = vmatprep.subr.mxu0 0.0
    %322 = vmatpush1.msra.mxu0 0.0
    %323 = vmatprep.subr.mxu0 0.0
    %324 = vmatpush1.msra.mxu0 0.0
    %325 = vmatprep.subr.mxu0 0.0
    %326 = vmatpush1.msra.mxu0 0.0
    %327 = vmatprep.subr.mxu0 0.0
    %328 = vmatpush1.msra.mxu0 0.0
    %329 = vmatprep.subr.mxu0 0.0
    %330 = vmatpush1.msra.mxu0 0.0
    %331 = vmatprep.subr.mxu0 0.0
    %332 = vmatpush1.msra.mxu0 0.0
    %333 = vmatprep.subr.mxu0 0.0
    %334 = vmatpush1.msra.mxu0 0.0
    %335 = vmatprep.subr.mxu0 0.0
    %336 = vmatpush1.msra.mxu0 0.0
    %337 = vmatprep.subr.mxu0 0.0
    %338 = vmatpush1.msra.mxu0 0.0
    %339 = vmatprep.subr.mxu0 0.0
    %340 = vmatpush1.msra.mxu0 0.0
    %341 = vmatprep.subr.mxu0 0.0
    %342 = vmatpush1.msra.mxu0 0.0
    %343 = vmatprep.subr.mxu0 0.0
    %344 = vmatpush1.msra.mxu0 0.0
    %345 = vmatprep.subr.mxu0 0.0
    %346 = vmatpush1.msra.mxu0 0.0
    %347 = vmatprep.subr.mxu0 0.0
    %348 = vmatpush1.msra.mxu0 0.0
    %349 = vmatprep.subr.mxu0 0.0
    %350 = vmatpush1.msra.mxu0 0.0
    %351 = vmatprep.mubr.f32.mxu0 0.0
    %v352 = vand.u32 %v88, 4294901760
    %353 = vmatmul.mubr.f32.gmra.mrb[0].mxu0 %v352
    %v354 = vpop.f32.mrb[0].mxu0
    %v355 = vadd.f32 %v194, %v354
    %v356 = vpop.f32.mrb[0].mxu0
    %357 = vmatprep.mubr.f32.mxu0 0.0
    %v358 = vand.u32 %v89, 4294901760
    %359 = vmatmul.mubr.f32.gmra.mrb[0].mxu0 %v358
    %v360 = vpop.f32.mrb[0].mxu0
    %v361 = vadd.f32 %v204, %v360
    %v362 = vpop.f32.mrb[0].mxu0
    %363 = vdwg.mxu0
    %364 = vmatprep.subr.mxu0 0.0
    %v365 = vand.u32 %v90, 4294901760
    %v366 = vsub.f32 %v90, %v365
    %367 = vmatpush1.msra.mxu0 %v366
    %368 = vmatprep.subr.mxu0 0.0
    %v369 = vand.u32 %v91, 4294901760
    %v370 = vsub.f32 %v91, %v369
    %371 = vmatpush1.msra.mxu0 %v370
    %372 = vmatprep.subr.mxu0 0.0
    %v373 = vand.u32 %v92, 4294901760
    %v374 = vsub.f32 %v92, %v373
    %375 = vmatpush1.msra.mxu0 %v374
    %376 = vmatprep.subr.mxu0 0.0
    %v377 = vand.u32 %v93, 4294901760
    %v378 = vsub.f32 %v93, %v377
    %379 = vmatpush1.msra.mxu0 %v378
    %380 = vmatprep.subr.mxu0 0.0
    %v381 = vand.u32 %v94, 4294901760
    %v382 = vsub.f32 %v94, %v381
    %383 = vmatpush1.msra.mxu0 %v382
    %384 = vmatprep.subr.mxu0 0.0
    %v385 = vand.u32 %v95, 4294901760
    %v386 = vsub.f32 %v95, %v385
    %387 = vmatpush1.msra.mxu0 %v386
    %388 = vmatprep.subr.mxu0 0.0
    %v389 = vand.u32 %v96, 4294901760
    %v390 = vsub.f32 %v96, %v389
    %391 = vmatpush1.msra.mxu0 %v390
    %392 = vmatprep.subr.mxu0 0.0
    %v393 = vand.u32 %v97, 4294901760
    %v394 = vsub.f32 %v97, %v393
    %395 = vmatpush1.msra.mxu0 %v394
    %396 = vmatprep.subr.mxu0 0.0
    %v397 = vand.u32 %v98, 4294901760
    %v398 = vsub.f32 %v98, %v397
    %399 = vmatpush1.msra.mxu0 %v398
    %400 = vmatprep.subr.mxu0 0.0
    %v401 = vand.u32 %v99, 4294901760
    %v402 = vsub.f32 %v99, %v401
    %403 = vmatpush1.msra.mxu0 %v402
    %404 = vmatprep.subr.mxu0 0.0
    %v405 = vand.u32 %v100, 4294901760
    %v406 = vsub.f32 %v100, %v405
    %407 = vmatpush1.msra.mxu0 %v406
    %408 = vmatprep.subr.mxu0 0.0
    %v409 = vand.u32 %v101, 4294901760
    %v410 = vsub.f32 %v101, %v409
    %411 = vmatpush1.msra.mxu0 %v410
    %412 = vmatprep.subr.mxu0 0.0
    %v413 = vand.u32 %v102, 4294901760
    %v414 = vsub.f32 %v102, %v413
    %415 = vmatpush1.msra.mxu0 %v414
    %416 = vmatprep.subr.mxu0 0.0
    %v417 = vand.u32 %v103, 4294901760
    %v418 = vsub.f32 %v103, %v417
    %419 = vmatpush1.msra.mxu0 %v418
    %420 = vmatprep.subr.mxu0 0.0
    %v421 = vand.u32 %v104, 4294901760
    %v422 = vsub.f32 %v104, %v421
    %423 = vmatpush1.msra.mxu0 %v422
    %424 = vmatprep.subr.mxu0 0.0
    %v425 = vand.u32 %v105, 4294901760
    %v426 = vsub.f32 %v105, %v425
    %427 = vmatpush1.msra.mxu0 %v426
    %428 = vmatprep.subr.mxu0 0.0
    %429 = vmatpush1.msra.mxu0 0.0
    %430 = vmatprep.subr.mxu0 0.0
    %431 = vmatpush1.msra.mxu0 0.0
    %432 = vmatprep.subr.mxu0 0.0
    %433 = vmatpush1.msra.mxu0 0.0
    %434 = vmatprep.subr.mxu0 0.0
    %435 = vmatpush1.msra.mxu0 0.0
    %436 = vmatprep.subr.mxu0 0.0
    %437 = vmatpush1.msra.mxu0 0.0
    %438 = vmatprep.subr.mxu0 0.0
    %439 = vmatpush1.msra.mxu0 0.0
    %440 = vmatprep.subr.mxu0 0.0
    %441 = vmatpush1.msra.mxu0 0.0
    %442 = vmatprep.subr.mxu0 0.0
    %443 = vmatpush1.msra.mxu0 0.0
    %444 = vmatprep.subr.mxu0 0.0
    %445 = vmatpush1.msra.mxu0 0.0
    %446 = vmatprep.subr.mxu0 0.0
    %447 = vmatpush1.msra.mxu0 0.0
    %448 = vmatprep.subr.mxu0 0.0
    %449 = vmatpush1.msra.mxu0 0.0
    %450 = vmatprep.subr.mxu0 0.0
    %451 = vmatpush1.msra.mxu0 0.0
    %452 = vmatprep.subr.mxu0 0.0
    %453 = vmatpush1.msra.mxu0 0.0
    %454 = vmatprep.subr.mxu0 0.0
    %455 = vmatpush1.msra.mxu0 0.0
    %456 = vmatprep.subr.mxu0 0.0
    %457 = vmatpush1.msra.mxu0 0.0
    %458 = vmatprep.subr.mxu0 0.0
    %459 = vmatpush1.msra.mxu0 0.0
    %460 = vmatprep.mubr.f32.mxu0 0.0
    %v461 = vand.u32 %v88, 4294901760
    %v462 = vsub.f32 %v88, %v461
    %463 = vmatmul.mubr.f32.gmra.mrb[0].mxu0 %v462
    %v464 = vpop.f32.mrb[0].mxu0
    %v465 = vadd.f32 %v355, %v464
    %v466 = vpop.f32.mrb[0].mxu0
    %467 = vmatprep.mubr.f32.mxu0 0.0
    %v468 = vand.u32 %v89, 4294901760
    %v469 = vsub.f32 %v89, %v468
    %470 = vmatmul.mubr.f32.gmra.mrb[0].mxu0 %v469
    %v471 = vpop.f32.mrb[0].mxu0
    %v472 = vadd.f32 %v361, %v471
    %v473 = vpop.f32.mrb[0].mxu0
    %474 = vdwg.mxu0
    %475 = vmatprep.subr.mxu0 0.0
    %v476 = vand.u32 %v90, 4294901760
    %477 = vmatpush1.msra.mxu0 %v476
    %478 = vmatprep.subr.mxu0 0.0
    %v479 = vand.u32 %v91, 4294901760
    %480 = vmatpush1.msra.mxu0 %v479
    %481 = vmatprep.subr.mxu0 0.0
    %v482 = vand.u32 %v92, 4294901760
    %483 = vmatpush1.msra.mxu0 %v482
    %484 = vmatprep.subr.mxu0 0.0
    %v485 = vand.u32 %v93, 4294901760
    %486 = vmatpush1.msra.mxu0 %v485
    %487 = vmatprep.subr.mxu0 0.0
    %v488 = vand.u32 %v94, 4294901760
    %489 = vmatpush1.msra.mxu0 %v488
    %490 = vmatprep.subr.mxu0 0.0
    %v491 = vand.u32 %v95, 4294901760
    %492 = vmatpush1.msra.mxu0 %v491
    %493 = vmatprep.subr.mxu0 0.0
    %v494 = vand.u32 %v96, 4294901760
    %495 = vmatpush1.msra.mxu0 %v494
    %496 = vmatprep.subr.mxu0 0.0
    %v497 = vand.u32 %v97, 4294901760
    %498 = vmatpush1.msra.mxu0 %v497
    %499 = vmatprep.subr.mxu0 0.0
    %v500 = vand.u32 %v98, 4294901760
    %501 = vmatpush1.msra.mxu0 %v500
    %502 = vmatprep.subr.mxu0 0.0
    %v503 = vand.u32 %v99, 4294901760
    %504 = vmatpush1.msra.mxu0 %v503
    %505 = vmatprep.subr.mxu0 0.0
    %v506 = vand.u32 %v100, 4294901760
    %507 = vmatpush1.msra.mxu0 %v506
    %508 = vmatprep.subr.mxu0 0.0
    %v509 = vand.u32 %v101, 4294901760
    %510 = vmatpush1.msra.mxu0 %v509
    %511 = vmatprep.subr.mxu0 0.0
    %v512 = vand.u32 %v102, 4294901760
    %513 = vmatpush1.msra.mxu0 %v512
    %514 = vmatprep.subr.mxu0 0.0
    %v515 = vand.u32 %v103, 4294901760
    %516 = vmatpush1.msra.mxu0 %v515
    %517 = vmatprep.subr.mxu0 0.0
    %v518 = vand.u32 %v104, 4294901760
    %519 = vmatpush1.msra.mxu0 %v518
    %520 = vmatprep.subr.mxu0 0.0
    %v521 = vand.u32 %v105, 4294901760
    %522 = vmatpush1.msra.mxu0 %v521
    %523 = vmatprep.subr.mxu0 0.0
    %524 = vmatpush1.msra.mxu0 0.0
    %525 = vmatprep.subr.mxu0 0.0
    %526 = vmatpush1.msra.mxu0 0.0
    %527 = vmatprep.subr.mxu0 0.0
    %528 = vmatpush1.msra.mxu0 0.0
    %529 = vmatprep.subr.mxu0 0.0
    %530 = vmatpush1.msra.mxu0 0.0
    %531 = vmatprep.subr.mxu0 0.0
    %532 = vmatpush1.msra.mxu0 0.0
    %533 = vmatprep.subr.mxu0 0.0
    %534 = vmatpush1.msra.mxu0 0.0
    %535 = vmatprep.subr.mxu0 0.0
    %536 = vmatpush1.msra.mxu0 0.0
    %537 = vmatprep.subr.mxu0 0.0
    %538 = vmatpush1.msra.mxu0 0.0
    %539 = vmatprep.subr.mxu0 0.0
    %540 = vmatpush1.msra.mxu0 0.0
    %541 = vmatprep.subr.mxu0 0.0
    %542 = vmatpush1.msra.mxu0 0.0
    %543 = vmatprep.subr.mxu0 0.0
    %544 = vmatpush1.msra.mxu0 0.0
    %545 = vmatprep.subr.mxu0 0.0
    %546 = vmatpush1.msra.mxu0 0.0
    %547 = vmatprep.subr.mxu0 0.0
    %548 = vmatpush1.msra.mxu0 0.0
    %549 = vmatprep.subr.mxu0 0.0
    %550 = vmatpush1.msra.mxu0 0.0
    %551 = vmatprep.subr.mxu0 0.0
    %552 = vmatpush1.msra.mxu0 0.0
    %553 = vmatprep.subr.mxu0 0.0
    %554 = vmatpush1.msra.mxu0 0.0
    %555 = vmatprep.mubr.f32.mxu0 0.0
    %v556 = vand.u32 %v88, 4294901760
    %v557 = vsub.f32 %v88, %v556
    %v558 = vand.u32 %v557, 4294901760
    %559 = vmatmul.mubr.f32.gmra.mrb[0].mxu0 %v558
    %v560 = vpop.f32.mrb[0].mxu0
    %v561 = vadd.f32 %v465, %v560
    %v562 = vpop.f32.mrb[0].mxu0
    %563 = vmatprep.mubr.f32.mxu0 0.0
    %v564 = vand.u32 %v89, 4294901760
    %v565 = vsub.f32 %v89, %v564
    %v566 = vand.u32 %v565, 4294901760
    %567 = vmatmul.mubr.f32.gmra.mrb[0].mxu0 %v566
    %v568 = vpop.f32.mrb[0].mxu0
    %v569 = vadd.f32 %v472, %v568
    %v570 = vpop.f32.mrb[0].mxu0
    %571 = vdwg.mxu0
    %572 = vmatprep.subr.mxu0 0.0
    %v573 = vand.u32 %v90, 4294901760
    %v574 = vsub.f32 %v90, %v573
    %v575 = vand.u32 %v574, 4294901760
    %576 = vmatpush1.msra.mxu0 %v575
    %577 = vmatprep.subr.mxu0 0.0
    %v578 = vand.u32 %v91, 4294901760
    %v579 = vsub.f32 %v91, %v578
    %v580 = vand.u32 %v579, 4294901760
    %581 = vmatpush1.msra.mxu0 %v580
    %582 = vmatprep.subr.mxu0 0.0
    %v583 = vand.u32 %v92, 4294901760
    %v584 = vsub.f32 %v92, %v583
    %v585 = vand.u32 %v584, 4294901760
    %586 = vmatpush1.msra.mxu0 %v585
    %587 = vmatprep.subr.mxu0 0.0
    %v588 = vand.u32 %v93, 4294901760
    %v589 = vsub.f32 %v93, %v588
    %v590 = vand.u32 %v589, 4294901760
    %591 = vmatpush1.msra.mxu0 %v590
    %592 = vmatprep.subr.mxu0 0.0
    %v593 = vand.u32 %v94, 4294901760
    %v594 = vsub.f32 %v94, %v593
    %v595 = vand.u32 %v594, 4294901760
    %596 = vmatpush1.msra.mxu0 %v595
    %597 = vmatprep.subr.mxu0 0.0
    %v598 = vand.u32 %v95, 4294901760
    %v599 = vsub.f32 %v95, %v598
    %v600 = vand.u32 %v599, 4294901760
    %601 = vmatpush1.msra.mxu0 %v600
    %602 = vmatprep.subr.mxu0 0.0
    %v603 = vand.u32 %v96, 4294901760
    %v604 = vsub.f32 %v96, %v603
    %v605 = vand.u32 %v604, 4294901760
    %606 = vmatpush1.msra.mxu0 %v605
    %607 = vmatprep.subr.mxu0 0.0
    %v608 = vand.u32 %v97, 4294901760
    %v609 = vsub.f32 %v97, %v608
    %v610 = vand.u32 %v609, 4294901760
    %611 = vmatpush1.msra.mxu0 %v610
    %612 = vmatprep.subr.mxu0 0.0
    %v613 = vand.u32 %v98, 4294901760
    %v614 = vsub.f32 %v98, %v613
    %v615 = vand.u32 %v614, 4294901760
    %616 = vmatpush1.msra.mxu0 %v615
    %617 = vmatprep.subr.mxu0 0.0
    %v618 = vand.u32 %v99, 4294901760
    %v619 = vsub.f32 %v99, %v618
    %v620 = vand.u32 %v619, 4294901760
    %621 = vmatpush1.msra.mxu0 %v620
    %622 = vmatprep.subr.mxu0 0.0
    %v623 = vand.u32 %v100, 4294901760
    %v624 = vsub.f32 %v100, %v623
    %v625 = vand.u32 %v624, 4294901760
    %626 = vmatpush1.msra.mxu0 %v625
    %627 = vmatprep.subr.mxu0 0.0
    %v628 = vand.u32 %v101, 4294901760
    %v629 = vsub.f32 %v101, %v628
    %v630 = vand.u32 %v629, 4294901760
    %631 = vmatpush1.msra.mxu0 %v630
    %632 = vmatprep.subr.mxu0 0.0
    %v633 = vand.u32 %v102, 4294901760
    %v634 = vsub.f32 %v102, %v633
    %v635 = vand.u32 %v634, 4294901760
    %636 = vmatpush1.msra.mxu0 %v635
    %637 = vmatprep.subr.mxu0 0.0
    %v638 = vand.u32 %v103, 4294901760
    %v639 = vsub.f32 %v103, %v638
    %v640 = vand.u32 %v639, 4294901760
    %641 = vmatpush1.msra.mxu0 %v640
    %642 = vmatprep.subr.mxu0 0.0
    %v643 = vand.u32 %v104, 4294901760
    %v644 = vsub.f32 %v104, %v643
    %v645 = vand.u32 %v644, 4294901760
    %646 = vmatpush1.msra.mxu0 %v645
    %647 = vmatprep.subr.mxu0 0.0
    %v648 = vand.u32 %v105, 4294901760
    %v649 = vsub.f32 %v105, %v648
    %v650 = vand.u32 %v649, 4294901760
    %651 = vmatpush1.msra.mxu0 %v650
    %652 = vmatprep.subr.mxu0 0.0
    %653 = vmatpush1.msra.mxu0 0.0
    %654 = vmatprep.subr.mxu0 0.0
    %655 = vmatpush1.msra.mxu0 0.0
    %656 = vmatprep.subr.mxu0 0.0
    %657 = vmatpush1.msra.mxu0 0.0
    %658 = vmatprep.subr.mxu0 0.0
    %659 = vmatpush1.msra.mxu0 0.0
    %660 = vmatprep.subr.mxu0 0.0
    %661 = vmatpush1.msra.mxu0 0.0
    %662 = vmatprep.subr.mxu0 0.0
    %663 = vmatpush1.msra.mxu0 0.0
    %664 = vmatprep.subr.mxu0 0.0
    %665 = vmatpush1.msra.mxu0 0.0
    %666 = vmatprep.subr.mxu0 0.0
    %667 = vmatpush1.msra.mxu0 0.0
    %668 = vmatprep.subr.mxu0 0.0
    %669 = vmatpush1.msra.mxu0 0.0
    %670 = vmatprep.subr.mxu0 0.0
    %671 = vmatpush1.msra.mxu0 0.0
    %672 = vmatprep.subr.mxu0 0.0
    %673 = vmatpush1.msra.mxu0 0.0
    %674 = vmatprep.subr.mxu0 0.0
    %675 = vmatpush1.msra.mxu0 0.0
    %676 = vmatprep.subr.mxu0 0.0
    %677 = vmatpush1.msra.mxu0 0.0
    %678 = vmatprep.subr.mxu0 0.0
    %679 = vmatpush1.msra.mxu0 0.0
    %680 = vmatprep.subr.mxu0 0.0
    %681 = vmatpush1.msra.mxu0 0.0
    %682 = vmatprep.subr.mxu0 0.0
    %683 = vmatpush1.msra.mxu0 0.0
    %684 = vmatprep.mubr.f32.mxu0 0.0
    %v685 = vand.u32 %v88, 4294901760
    %686 = vmatmul.mubr.f32.gmra.mrb[0].mxu0 %v685
    %v687 = vpop.f32.mrb[0].mxu0
    %v688 = vadd.f32 %v561, %v687
    %v689 = vpop.f32.mrb[0].mxu0
    %690 = vmatprep.mubr.f32.mxu0 0.0
    %v691 = vand.u32 %v89, 4294901760
    %692 = vmatmul.mubr.f32.gmra.mrb[0].mxu0 %v691
    %v693 = vpop.f32.mrb[0].mxu0
    %v694 = vadd.f32 %v569, %v693
    %v695 = vpop.f32.mrb[0].mxu0
    %696 = vdwg.mxu0
    %697 = vmatprep.subr.mxu0 0.0
    %v698 = vand.u32 %v90, 4294901760
    %699 = vmatpush1.msra.mxu0 %v698
    %700 = vmatprep.subr.mxu0 0.0
    %v701 = vand.u32 %v91, 4294901760
    %702 = vmatpush1.msra.mxu0 %v701
    %703 = vmatprep.subr.mxu0 0.0
    %v704 = vand.u32 %v92, 4294901760
    %705 = vmatpush1.msra.mxu0 %v704
    %706 = vmatprep.subr.mxu0 0.0
    %v707 = vand.u32 %v93, 4294901760
    %708 = vmatpush1.msra.mxu0 %v707
    %709 = vmatprep.subr.mxu0 0.0
    %v710 = vand.u32 %v94, 4294901760
    %711 = vmatpush1.msra.mxu0 %v710
    %712 = vmatprep.subr.mxu0 0.0
    %v713 = vand.u32 %v95, 4294901760
    %714 = vmatpush1.msra.mxu0 %v713
    %715 = vmatprep.subr.mxu0 0.0
    %v716 = vand.u32 %v96, 4294901760
    %717 = vmatpush1.msra.mxu0 %v716
    %718 = vmatprep.subr.mxu0 0.0
    %v719 = vand.u32 %v97, 4294901760
    %720 = vmatpush1.msra.mxu0 %v719
    %721 = vmatprep.subr.mxu0 0.0
    %v722 = vand.u32 %v98, 4294901760
    %723 = vmatpush1.msra.mxu0 %v722
    %724 = vmatprep.subr.mxu0 0.0
    %v725 = vand.u32 %v99, 4294901760
    %726 = vmatpush1.msra.mxu0 %v725
    %727 = vmatprep.subr.mxu0 0.0
    %v728 = vand.u32 %v100, 4294901760
    %729 = vmatpush1.msra.mxu0 %v728
    %730 = vmatprep.subr.mxu0 0.0
    %v731 = vand.u32 %v101, 4294901760
    %732 = vmatpush1.msra.mxu0 %v731
    %733 = vmatprep.subr.mxu0 0.0
    %v734 = vand.u32 %v102, 4294901760
    %735 = vmatpush1.msra.mxu0 %v734
    %736 = vmatprep.subr.mxu0 0.0
    %v737 = vand.u32 %v103, 4294901760
    %738 = vmatpush1.msra.mxu0 %v737
    %739 = vmatprep.subr.mxu0 0.0
    %v740 = vand.u32 %v104, 4294901760
    %741 = vmatpush1.msra.mxu0 %v740
    %742 = vmatprep.subr.mxu0 0.0
    %v743 = vand.u32 %v105, 4294901760
    %744 = vmatpush1.msra.mxu0 %v743
    %745 = vmatprep.subr.mxu0 0.0
    %746 = vmatpush1.msra.mxu0 0.0
    %747 = vmatprep.subr.mxu0 0.0
    %748 = vmatpush1.msra.mxu0 0.0
    %749 = vmatprep.subr.mxu0 0.0
    %750 = vmatpush1.msra.mxu0 0.0
    %751 = vmatprep.subr.mxu0 0.0
    %752 = vmatpush1.msra.mxu0 0.0
    %753 = vmatprep.subr.mxu0 0.0
    %754 = vmatpush1.msra.mxu0 0.0
    %755 = vmatprep.subr.mxu0 0.0
    %756 = vmatpush1.msra.mxu0 0.0
    %757 = vmatprep.subr.mxu0 0.0
    %758 = vmatpush1.msra.mxu0 0.0
    %759 = vmatprep.subr.mxu0 0.0
    %760 = vmatpush1.msra.mxu0 0.0
    %761 = vmatprep.subr.mxu0 0.0
    %762 = vmatpush1.msra.mxu0 0.0
    %763 = vmatprep.subr.mxu0 0.0
    %764 = vmatpush1.msra.mxu0 0.0
    %765 = vmatprep.subr.mxu0 0.0
    %766 = vmatpush1.msra.mxu0 0.0
    %767 = vmatprep.subr.mxu0 0.0
    %768 = vmatpush1.msra.mxu0 0.0
    %769 = vmatprep.subr.mxu0 0.0
    %770 = vmatpush1.msra.mxu0 0.0
    %771 = vmatprep.subr.mxu0 0.0
    %772 = vmatpush1.msra.mxu0 0.0
    %773 = vmatprep.subr.mxu0 0.0
    %774 = vmatpush1.msra.mxu0 0.0
    %775 = vmatprep.subr.mxu0 0.0
    %776 = vmatpush1.msra.mxu0 0.0
    %777 = vmatprep.mubr.f32.mxu0 0.0
    %v778 = vand.u32 %v88, 4294901760
    %779 = vmatmul.mubr.f32.gmra.mrb[0].mxu0 %v778
    %v780 = vpop.f32.mrb[0].mxu0
    %v781 = vadd.f32 %v688, %v780
    %v782 = vpop.f32.mrb[0].mxu0
    %783 = vmatprep.mubr.f32.mxu0 0.0
    %v784 = vand.u32 %v89, 4294901760
    %785 = vmatmul.mubr.f32.gmra.mrb[0].mxu0 %v784
    %v786 = vpop.f32.mrb[0].mxu0
    %v787 = vadd.f32 %v694, %v786
    %v788 = vpop.f32.mrb[0].mxu0
    %789 = vdwg.mxu0
    %790 = vst [vmem:[#allocation5] sm:$0xff] %v781
    %791 = vst [vmem:[#allocation5 + $0x8] sm:$0xff] %v787
    // Predicated region
    $region14: #{tpu_custom_call.1} parent=1 // pred_check
      _
    $region15: #{tpu_custom_call.1} parent=1 // pred_check_branch
      %793 = sbr.rel (0) target = $region17
    $region16: #{tpu_custom_call.1} parent=1 // pred_region
      %s795 = ssub.s32 256, 256
      %796 = vsyncadd [#allocation4], %s795
      %s797 = sshll.u32 [#allocation5], 4
      %s798 = int_to_ptr.vmem [resolvable:$true] %s797
      %803 = dma.vmem_to_hbm [thread:$0]  %s798, 256, %s2, [#allocation4], 128, 128, 8
    $region17: #{tpu_custom_call.1} parent=1 // pred_fallthru
      _
    // Predicated region
    $region18: #{tpu_custom_call.1} parent=1 // pred_check
      _
    $region19: #{tpu_custom_call.1} parent=1 // pred_check_branch
      %805 = sbr.rel (0) target = $region21
    $region20: #{tpu_custom_call.1} parent=1 // pred_region
      %806 = dma.done [#allocation4], 256
    $region21: #{tpu_custom_call.1} parent=1 // pred_fallthru
      _
    %807 = vsyncpa [#allocation3], 1
    %808 = vsyncpa [#allocation4], 1

</llo_original>
